<compile_context>
chip_gen: v7x
topology: tpu7x:2x2x1
jax: 0.10.0
libtpu: 0.0.40
codegen_flags: <defaults>
</compile_context>

<pallas_src>
import math

import jax
import jax.numpy as jnp
from jax.experimental import pallas as pl
from jax.experimental.pallas import tpu as pltpu

# ---------------- config (small, consistent with the module) ----------------
BATCH = 2
SEQ = 8
HIDDEN = 32
NUM_HEADS = 4
HEAD = HIDDEN // NUM_HEADS
FF = 64
EPS = 1e-5

# -------- parameter-slab row layout (all rows padded to 128 lanes, f32) -----
LANES = 128
R_WQKV = 0                      # (32, 96)  fused [Wq | Wk | Wv]
R_WO = R_WQKV + HIDDEN          # (32, 32)
R_W1 = R_WO + HIDDEN            # (32, 64)
R_W2 = R_W1 + HIDDEN            # (64, 32)
R_BQKV = R_W2 + FF              # (1, 96)   fused [bq | bk | bv]
R_B1 = R_BQKV + 1               # (1, 64)
R_G1 = R_B1 + 1                 # (1, 32)
R_BE1 = R_G1 + 1
R_G2 = R_BE1 + 1
R_BE2 = R_G2 + 1
R_BO = R_BE2 + 1
R_B2 = R_BO + 1
N_ROWS = R_B2 + 1               # = 168, multiple of 8 sublanes


def _layernorm(x, gamma, beta):
    mu = jnp.mean(x, axis=-1, keepdims=True)
    var = jnp.mean((x - mu) ** 2, axis=-1, keepdims=True)
    return (x - mu) * jax.lax.rsqrt(var + EPS) * gamma + beta


def _erf_approx(z):
    # Abramowitz & Stegun 7.1.26, |error| <= 1.5e-7. Uses only exp / mul / select,
    # all of which lower cleanly in Pallas TPU.
    a1, a2, a3, a4, a5 = 0.254829592, -0.284496736, 1.421413741, -1.453152027, 1.061405429
    pc = 0.3275911
    az = jnp.abs(z)
    t = 1.0 / (1.0 + pc * az)
    poly = t * (a1 + t * (a2 + t * (a3 + t * (a4 + t * a5))))
    y = 1.0 - poly * jnp.exp(-az * az)
    return jnp.where(z < 0.0, -y, y)


def _gelu_exact(x):
    # nn.GELU() default = exact erf-based GELU
    return 0.5 * x * (1.0 + _erf_approx(x * (1.0 / math.sqrt(2.0))))


def encoder_layer_kernel(x_ref, p_ref, out_ref):
    # x_ref: (B*S, H) f32, p_ref: (N_ROWS, 128) f32 parameter slab, out_ref: (B*S, H)
    x = x_ref[...]                                            # (16, 32)

    # ---- static row-range views into the single parameter slab ----
    wqkv = p_ref[R_WQKV:R_WQKV + HIDDEN, 0:3 * HIDDEN]        # (32, 96)
    wo = p_ref[R_WO:R_WO + HIDDEN, 0:HIDDEN]                  # (32, 32)
    w1 = p_ref[R_W1:R_W1 + HIDDEN, 0:FF]                      # (32, 64)
    w2 = p_ref[R_W2:R_W2 + FF, 0:HIDDEN]                      # (64, 32)
    bqkv = p_ref[R_BQKV:R_BQKV + 1, 0:3 * HIDDEN]             # (1, 96)
    b1 = p_ref[R_B1:R_B1 + 1, 0:FF]                           # (1, 64)
    g1 = p_ref[R_G1:R_G1 + 1, 0:HIDDEN]                       # (1, 32)
    be1 = p_ref[R_BE1:R_BE1 + 1, 0:HIDDEN]
    g2 = p_ref[R_G2:R_G2 + 1, 0:HIDDEN]
    be2 = p_ref[R_BE2:R_BE2 + 1, 0:HIDDEN]
    bo = p_ref[R_BO:R_BO + 1, 0:HIDDEN]
    b2 = p_ref[R_B2:R_B2 + 1, 0:HIDDEN]

    # ---- LayerNorm 1 ----
    h1 = _layernorm(x, g1, be1)                               # (16, 32)

    # ---- fused QKV: one (16,32)x(32,96) MXU push ----
    qkv = jnp.dot(h1, wqkv, preferred_element_type=jnp.float32) + bqkv   # (16, 96)

    # head split: lane slices stacked on a new leading dim, then a tile-aligned
    # reshape that splits the B*S sublanes into (B, S) and merges head into the
    # leading (batched) dim:  n = head * BATCH + b.
    def split_heads(base):
        cols = [qkv[:, base + h * HEAD: base + (h + 1) * HEAD] for h in range(NUM_HEADS)]
        stacked = jnp.stack(cols, axis=0)                     # (NH, B*S, HEAD)
        return stacked.reshape(NUM_HEADS * BATCH, SEQ, HEAD)  # (8, 8, 8)

    q = split_heads(0)
    k = split_heads(HIDDEN)
    v = split_heads(2 * HIDDEN)

    # ---- attention, batched over (head, batch); mask=None, dropout=identity ----
    scale = 1.0 / math.sqrt(HEAD)
    s = jnp.einsum("nqd,nkd->nqk", q, k, preferred_element_type=jnp.float32) * scale
    s = s - jnp.max(s, axis=-1, keepdims=True)
    p = jnp.exp(s)
    p = p * pl.reciprocal(jnp.sum(p, axis=-1, keepdims=True), approx=True)
    ctx = jnp.einsum("nqk,nkd->nqd", p, v, preferred_element_type=jnp.float32)  # (8,8,8)

    # ---- re-assemble context in standard ((b,s),(h,d)) layout, then a single
    #      out-projection matmul (head reduction accumulated inside the MXU) ----
    ctx_heads = [
        ctx[h * BATCH:(h + 1) * BATCH].reshape(BATCH * SEQ, HEAD)   # (16, 8), rows (b,s)
        for h in range(NUM_HEADS)
    ]
    ctx_flat = jnp.concatenate(ctx_heads, axis=1)                    # (16, 32), cols (h,d)
    attn = jnp.dot(ctx_flat, wo, preferred_element_type=jnp.float32) + bo

    # residual 1 (dropout is identity in eval)
    x = x + attn

    # ---- LayerNorm 2 + feed-forward ----
    h2 = _layernorm(x, g2, be2)
    f = jnp.dot(h2, w1, preferred_element_type=jnp.float32) + b1
    f = _gelu_exact(f)
    f = jnp.dot(f, w2, preferred_element_type=jnp.float32) + b2

    # residual 2
    out_ref[...] = (x + f).astype(out_ref.dtype)


# ---------------- wrapper-side packing (call ONCE, outside the hot path) ----------------
def pack_params(params):
    (wq, bq, wk, bk, wv, bv, wo, bo, g1, be1, g2, be2, w1, b1, w2, b2) = params

    wqkv = jnp.concatenate([wq, wk, wv], axis=1)      # (32, 96), head-major columns per block
    bqkv = jnp.concatenate([bq, bk, bv], axis=1)      # (1, 96)

    def pad_lanes(a):
        return jnp.pad(a.astype(jnp.float32), ((0, 0), (0, LANES - a.shape[1])))

    slab = jnp.concatenate(
        [pad_lanes(wqkv),   # rows   0: 32
         pad_lanes(wo),     # rows  32: 64
         pad_lanes(w1),     # rows  64: 96
         pad_lanes(w2),     # rows  96:160
         pad_lanes(bqkv),   # row  160
         pad_lanes(b1),     # row  161
         pad_lanes(g1),     # row  162
         pad_lanes(be1),    # row  163
         pad_lanes(g2),     # row  164
         pad_lanes(be2),    # row  165
         pad_lanes(bo),     # row  166
         pad_lanes(b2)],    # row  167
        axis=0)
    assert slab.shape == (N_ROWS, LANES)
    return slab


def transformer_encoder_layer(x, packed_params):
    B, S, H = x.shape
    BS = B * S
    x2 = x.reshape(BS, H)

    out2 = pl.pallas_call(
        encoder_layer_kernel,
        out_shape=jax.ShapeDtypeStruct((BS, H), jnp.float32),
        grid=(1,),                                        # single step: whole problem at once
        in_specs=[
            pl.BlockSpec((BS, H), lambda i: (0, 0)),
            pl.BlockSpec((N_ROWS, LANES), lambda i: (0, 0)),
        ],
        out_specs=pl.BlockSpec((BS, H), lambda i: (0, 0)),
        compiler_params=pltpu.CompilerParams(
            dimension_semantics=("arbitrary",),           # ~1 us of work: no cross-TC split
        ),
    )(x2, packed_params)
    return out2.reshape(B, S, H)


# ---------------- pure-JAX reference (for correctness check) ----------------
def reference(x, params):
    (wq, bq, wk, bk, wv, bv, wo, bo, g1, be1, g2, be2, w1, b1, w2, b2) = params
    B, S, H = x.shape

    def ln(z, g, b):
        mu = jnp.mean(z, -1, keepdims=True)
        var = jnp.mean((z - mu) ** 2, -1, keepdims=True)
        return (z - mu) / jnp.sqrt(var + EPS) * g[0] + b[0]

    h1 = ln(x, g1, be1)
    q = h1 @ wq + bq[0]
    k = h1 @ wk + bk[0]
    v = h1 @ wv + bv[0]
    q = q.reshape(B, S, NUM_HEADS, HEAD).transpose(0, 2, 1, 3)
    k = k.reshape(B, S, NUM_HEADS, HEAD).transpose(0, 2, 1, 3)
    v = v.reshape(B, S, NUM_HEADS, HEAD).transpose(0, 2, 1, 3)
    scores = jnp.einsum("bhqd,bhkd->bhqk", q, k) / math.sqrt(HEAD)
    p = jax.nn.softmax(scores, axis=-1)
    ctx = jnp.einsum("bhqk,bhkd->bhqd", p, v)
    ctx = ctx.transpose(0, 2, 1, 3).reshape(B, S, H)
    attn = ctx @ wo + bo[0]
    x = x + attn
    h2 = ln(x, g2, be2)
    f = h2 @ w1 + b1[0]
    f = jax.nn.gelu(f, approximate=False)                 # exact erf GELU (nn.GELU default)
    f = f @ w2 + b2[0]
    return x + f


if __name__ == "__main__":
    key = jax.random.PRNGKey(0)
    keys = jax.random.split(key, 17)

    def w(k, shape, scale=0.05):
        return jax.random.normal(k, shape, jnp.float32) * scale

    # Linear weights stored as (in, out); biases / LN params as (1, N)
    wq = w(keys[0], (HIDDEN, HIDDEN)); bq = w(keys[1], (1, HIDDEN))
    wk = w(keys[2], (HIDDEN, HIDDEN)); bk = w(keys[3], (1, HIDDEN))
    wv = w(keys[4], (HIDDEN, HIDDEN)); bv = w(keys[5], (1, HIDDEN))
    wo = w(keys[6], (HIDDEN, HIDDEN)); bo = w(keys[7], (1, HIDDEN))
    g1 = jnp.ones((1, HIDDEN), jnp.float32) + w(keys[8], (1, HIDDEN))
    be1 = w(keys[9], (1, HIDDEN))
    g2 = jnp.ones((1, HIDDEN), jnp.float32) + w(keys[10], (1, HIDDEN))
    be2 = w(keys[11], (1, HIDDEN))
    w1 = w(keys[12], (HIDDEN, FF)); b1 = w(keys[13], (1, FF))
    w2 = w(keys[14], (FF, HIDDEN)); b2 = w(keys[15], (1, HIDDEN))

    params = (wq, bq, wk, bk, wv, bv, wo, bo, g1, be1, g2, be2, w1, b1, w2, b2)

    # pack once (hoisted out of the per-call path)
    packed = jax.block_until_ready(pack_params(params))

    x = jax.random.normal(keys[16], (BATCH, SEQ, HIDDEN), jnp.float32)

    out = transformer_encoder_layer(x, packed)
    out = jax.block_until_ready(out)

    ref = reference(x, params)
    assert out.shape == (BATCH, SEQ, HIDDEN)
    # tolerance 2e-4: pl.reciprocal(approx=True) in softmax + polynomial erf (<=1.5e-7)
    assert jnp.allclose(out, ref, atol=2e-4, rtol=2e-4), (
        f"max abs err {jnp.max(jnp.abs(out - ref))}"
    )

    # TODO(synk): optional attention mask and dropout (train-mode) paths are not
    # implemented; eval-mode, mask=None semantics are reproduced exactly.
    print("KERNEL_OK")
</pallas_src>

<mosaic_0001>
module attributes {stable_mosaic.version = 11 : i64} {
  func.func @encoder_layer_kernel(%arg0: i32, %arg1: memref<16x32xf32, #tpu.memory_space<vmem>>, %arg2: memref<168x128xf32, #tpu.memory_space<vmem>>, %arg3: memref<16x32xf32, #tpu.memory_space<vmem>>) attributes {dimension_semantics = [#tpu.dimension_semantics<arbitrary>], iteration_bounds = array<i64: 1>, scalar_prefetch = 0 : i64, scratch_operands = 0 : i64, tpu.core_type = #tpu.core_type<tc>, window_params = [{pipeline_mode = #tpu.pipeline_mode<synchronous>, transform_indices = @transform_0, window_bounds = array<i64: 16, 32>}, {pipeline_mode = #tpu.pipeline_mode<synchronous>, transform_indices = @transform_1, window_bounds = array<i64: 168, 128>}, {pipeline_mode = #tpu.pipeline_mode<synchronous>, transform_indices = @transform_2, window_bounds = array<i64: 16, 32>}]} {
    %c0 = arith.constant 0 : index
    %c0_0 = arith.constant 0 : index
    %0 = vector.load %arg1[%c0, %c0_0] : memref<16x32xf32, #tpu.memory_space<vmem>>, vector<16x32xf32>
    %c0_1 = arith.constant 0 : index
    %c0_2 = arith.constant 0 : index
    %1 = vector.load %arg2[%c0_1, %c0_2] : memref<168x128xf32, #tpu.memory_space<vmem>>, vector<32x96xf32>
    %c32 = arith.constant 32 : index
    %c0_3 = arith.constant 0 : index
    %2 = vector.load %arg2[%c32, %c0_3] : memref<168x128xf32, #tpu.memory_space<vmem>>, vector<32x32xf32>
    %c64 = arith.constant 64 : index
    %c0_4 = arith.constant 0 : index
    %3 = vector.load %arg2[%c64, %c0_4] : memref<168x128xf32, #tpu.memory_space<vmem>>, vector<32x64xf32>
    %c96 = arith.constant 96 : index
    %c0_5 = arith.constant 0 : index
    %4 = vector.load %arg2[%c96, %c0_5] : memref<168x128xf32, #tpu.memory_space<vmem>>, vector<64x32xf32>
    %c160 = arith.constant 160 : index
    %c0_6 = arith.constant 0 : index
    %5 = vector.load %arg2[%c160, %c0_6] : memref<168x128xf32, #tpu.memory_space<vmem>>, vector<1x96xf32>
    %c161 = arith.constant 161 : index
    %c0_7 = arith.constant 0 : index
    %6 = vector.load %arg2[%c161, %c0_7] : memref<168x128xf32, #tpu.memory_space<vmem>>, vector<1x64xf32>
    %c162 = arith.constant 162 : index
    %c0_8 = arith.constant 0 : index
    %7 = vector.load %arg2[%c162, %c0_8] : memref<168x128xf32, #tpu.memory_space<vmem>>, vector<1x32xf32>
    %c163 = arith.constant 163 : index
    %c0_9 = arith.constant 0 : index
    %8 = vector.load %arg2[%c163, %c0_9] : memref<168x128xf32, #tpu.memory_space<vmem>>, vector<1x32xf32>
    %c164 = arith.constant 164 : index
    %c0_10 = arith.constant 0 : index
    %9 = vector.load %arg2[%c164, %c0_10] : memref<168x128xf32, #tpu.memory_space<vmem>>, vector<1x32xf32>
    %c165 = arith.constant 165 : index
    %c0_11 = arith.constant 0 : index
    %10 = vector.load %arg2[%c165, %c0_11] : memref<168x128xf32, #tpu.memory_space<vmem>>, vector<1x32xf32>
    %c166 = arith.constant 166 : index
    %c0_12 = arith.constant 0 : index
    %11 = vector.load %arg2[%c166, %c0_12] : memref<168x128xf32, #tpu.memory_space<vmem>>, vector<1x32xf32>
    %c167 = arith.constant 167 : index
    %c0_13 = arith.constant 0 : index
    %12 = vector.load %arg2[%c167, %c0_13] : memref<168x128xf32, #tpu.memory_space<vmem>>, vector<1x32xf32>
    %cst = arith.constant dense<0.000000e+00> : vector<16xf32>
    %13 = vector.multi_reduction <add>, %0, %cst [1] : vector<16x32xf32> to vector<16xf32>
    %14 = vector.shape_cast %13 : vector<16xf32> to vector<16x1xf32>
    %cst_14 = arith.constant 3.200000e+01 : f32
    %15 = vector.broadcast %cst_14 : f32 to vector<16x1xf32>
    %16 = arith.divf %14, %15 : vector<16x1xf32>
    %17 = vector.broadcast %16 : vector<16x1xf32> to vector<16x32xf32>
    %18 = arith.subf %0, %17 : vector<16x32xf32>
    %19 = arith.mulf %18, %18 : vector<16x32xf32>
    %cst_15 = arith.constant dense<0.000000e+00> : vector<16xf32>
    %20 = vector.multi_reduction <add>, %19, %cst_15 [1] : vector<16x32xf32> to vector<16xf32>
    %21 = vector.shape_cast %20 : vector<16xf32> to vector<16x1xf32>
    %cst_16 = arith.constant 3.200000e+01 : f32
    %22 = vector.broadcast %cst_16 : f32 to vector<16x1xf32>
    %23 = arith.divf %21, %22 : vector<16x1xf32>
    %24 = vector.broadcast %16 : vector<16x1xf32> to vector<16x32xf32>
    %25 = arith.subf %0, %24 : vector<16x32xf32>
    %cst_17 = arith.constant 9.99999974E-6 : f32
    %26 = vector.broadcast %cst_17 : f32 to vector<16x1xf32>
    %27 = arith.addf %23, %26 : vector<16x1xf32>
    %28 = math.rsqrt %27 : vector<16x1xf32>
    %29 = vector.broadcast %28 : vector<16x1xf32> to vector<16x32xf32>
    %30 = arith.mulf %25, %29 : vector<16x32xf32>
    %31 = vector.broadcast %7 : vector<1x32xf32> to vector<16x32xf32>
    %32 = arith.mulf %30, %31 : vector<16x32xf32>
    %33 = vector.broadcast %8 : vector<1x32xf32> to vector<16x32xf32>
    %34 = arith.addf %32, %33 : vector<16x32xf32>
    %cst_18 = arith.constant dense<0.000000e+00> : vector<16x96xf32>
    %35 = tpu.matmul %34, %1, %cst_18 {dimension_numbers = #tpu.dot_dimension_numbers<[1], [0], [0], [1], [0, 0, 1, 1], [], []>} : vector<16x32xf32>, vector<32x96xf32>, vector<16x96xf32> -> vector<16x96xf32>
    %36 = vector.broadcast %5 : vector<1x96xf32> to vector<16x96xf32>
    %37 = arith.addf %35, %36 : vector<16x96xf32>
    %38 = vector.extract_strided_slice %37 {offsets = [0, 0], sizes = [16, 8], strides = [1, 1]} : vector<16x96xf32> to vector<16x8xf32>
    %39 = vector.extract_strided_slice %37 {offsets = [0, 8], sizes = [16, 8], strides = [1, 1]} : vector<16x96xf32> to vector<16x8xf32>
    %40 = vector.extract_strided_slice %37 {offsets = [0, 16], sizes = [16, 8], strides = [1, 1]} : vector<16x96xf32> to vector<16x8xf32>
    %41 = vector.extract_strided_slice %37 {offsets = [0, 24], sizes = [16, 8], strides = [1, 1]} : vector<16x96xf32> to vector<16x8xf32>
    %42 = vector.shape_cast %38 : vector<16x8xf32> to vector<1x16x8xf32>
    %43 = vector.shape_cast %39 : vector<16x8xf32> to vector<1x16x8xf32>
    %44 = vector.shape_cast %40 : vector<16x8xf32> to vector<1x16x8xf32>
    %45 = vector.shape_cast %41 : vector<16x8xf32> to vector<1x16x8xf32>
    %46 = tpu.concatenate %42, %43, %44, %45 in 0 : vector<1x16x8xf32>, vector<1x16x8xf32>, vector<1x16x8xf32>, vector<1x16x8xf32> -> vector<4x16x8xf32>
    %47 = vector.shape_cast %46 : vector<4x16x8xf32> to vector<8x8x8xf32>
    %48 = vector.extract_strided_slice %37 {offsets = [0, 32], sizes = [16, 8], strides = [1, 1]} : vector<16x96xf32> to vector<16x8xf32>
    %49 = vector.extract_strided_slice %37 {offsets = [0, 40], sizes = [16, 8], strides = [1, 1]} : vector<16x96xf32> to vector<16x8xf32>
    %50 = vector.extract_strided_slice %37 {offsets = [0, 48], sizes = [16, 8], strides = [1, 1]} : vector<16x96xf32> to vector<16x8xf32>
    %51 = vector.extract_strided_slice %37 {offsets = [0, 56], sizes = [16, 8], strides = [1, 1]} : vector<16x96xf32> to vector<16x8xf32>
    %52 = vector.shape_cast %48 : vector<16x8xf32> to vector<1x16x8xf32>
    %53 = vector.shape_cast %49 : vector<16x8xf32> to vector<1x16x8xf32>
    %54 = vector.shape_cast %50 : vector<16x8xf32> to vector<1x16x8xf32>
    %55 = vector.shape_cast %51 : vector<16x8xf32> to vector<1x16x8xf32>
    %56 = tpu.concatenate %52, %53, %54, %55 in 0 : vector<1x16x8xf32>, vector<1x16x8xf32>, vector<1x16x8xf32>, vector<1x16x8xf32> -> vector<4x16x8xf32>
    %57 = vector.shape_cast %56 : vector<4x16x8xf32> to vector<8x8x8xf32>
    %58 = vector.extract_strided_slice %37 {offsets = [0, 64], sizes = [16, 8], strides = [1, 1]} : vector<16x96xf32> to vector<16x8xf32>
    %59 = vector.extract_strided_slice %37 {offsets = [0, 72], sizes = [16, 8], strides = [1, 1]} : vector<16x96xf32> to vector<16x8xf32>
    %60 = vector.extract_strided_slice %37 {offsets = [0, 80], sizes = [16, 8], strides = [1, 1]} : vector<16x96xf32> to vector<16x8xf32>
    %61 = vector.extract_strided_slice %37 {offsets = [0, 88], sizes = [16, 8], strides = [1, 1]} : vector<16x96xf32> to vector<16x8xf32>
    %62 = vector.shape_cast %58 : vector<16x8xf32> to vector<1x16x8xf32>
    %63 = vector.shape_cast %59 : vector<16x8xf32> to vector<1x16x8xf32>
    %64 = vector.shape_cast %60 : vector<16x8xf32> to vector<1x16x8xf32>
    %65 = vector.shape_cast %61 : vector<16x8xf32> to vector<1x16x8xf32>
    %66 = tpu.concatenate %62, %63, %64, %65 in 0 : vector<1x16x8xf32>, vector<1x16x8xf32>, vector<1x16x8xf32>, vector<1x16x8xf32> -> vector<4x16x8xf32>
    %67 = vector.shape_cast %66 : vector<4x16x8xf32> to vector<8x8x8xf32>
    "tpu.trace_start"() <{level = 10 : i32, message = "nqd,nkd->nqk"}> : () -> ()
    %cst_19 = arith.constant dense<0.000000e+00> : vector<8x8x8xf32>
    %68 = tpu.matmul %47, %57, %cst_19 {dimension_numbers = #tpu.dot_dimension_numbers<[2], [2], [1], [1], [0, 0, 0, 1, 1, 1], [0], [0]>} : vector<8x8x8xf32>, vector<8x8x8xf32>, vector<8x8x8xf32> -> vector<8x8x8xf32>
    "tpu.trace_stop"() : () -> ()
    %cst_20 = arith.constant 0.353553385 : f32
    %69 = vector.broadcast %cst_20 : f32 to vector<8x8x8xf32>
    %70 = arith.mulf %68, %69 : vector<8x8x8xf32>
    %cst_21 = arith.constant dense<0xFF800000> : vector<8x8xf32>
    %71 = vector.multi_reduction <maximumf>, %70, %cst_21 [2] : vector<8x8x8xf32> to vector<8x8xf32>
    %72 = vector.shape_cast %71 : vector<8x8xf32> to vector<8x8x1xf32>
    %73 = vector.broadcast %72 : vector<8x8x1xf32> to vector<8x8x8xf32>
    %74 = arith.subf %70, %73 : vector<8x8x8xf32>
    %75 = math.exp %74 : vector<8x8x8xf32>
    %cst_22 = arith.constant dense<0.000000e+00> : vector<8x8xf32>
    %76 = vector.multi_reduction <add>, %75, %cst_22 [2] : vector<8x8x8xf32> to vector<8x8xf32>
    %77 = vector.shape_cast %76 : vector<8x8xf32> to vector<8x8x1xf32>
    %78 = tpu.reciprocal %77 {approx = true} : vector<8x8x1xf32> -> vector<8x8x1xf32>
    %79 = vector.broadcast %78 : vector<8x8x1xf32> to vector<8x8x8xf32>
    %80 = arith.mulf %75, %79 : vector<8x8x8xf32>
    "tpu.trace_start"() <{level = 10 : i32, message = "nqk,nkd->nqd"}> : () -> ()
    %cst_23 = arith.constant dense<0.000000e+00> : vector<8x8x8xf32>
    %81 = tpu.matmul %80, %67, %cst_23 {dimension_numbers = #tpu.dot_dimension_numbers<[2], [1], [1], [2], [0, 0, 0, 1, 1, 2], [0], [0]>} : vector<8x8x8xf32>, vector<8x8x8xf32>, vector<8x8x8xf32> -> vector<8x8x8xf32>
    "tpu.trace_stop"() : () -> ()
    %82 = vector.extract_strided_slice %81 {offsets = [0, 0, 0], sizes = [2, 8, 8], strides = [1, 1, 1]} : vector<8x8x8xf32> to vector<2x8x8xf32>
    %83 = vector.shape_cast %82 : vector<2x8x8xf32> to vector<16x8xf32>
    %84 = vector.extract_strided_slice %81 {offsets = [2, 0, 0], sizes = [2, 8, 8], strides = [1, 1, 1]} : vector<8x8x8xf32> to vector<2x8x8xf32>
    %85 = vector.shape_cast %84 : vector<2x8x8xf32> to vector<16x8xf32>
    %86 = vector.extract_strided_slice %81 {offsets = [4, 0, 0], sizes = [2, 8, 8], strides = [1, 1, 1]} : vector<8x8x8xf32> to vector<2x8x8xf32>
    %87 = vector.shape_cast %86 : vector<2x8x8xf32> to vector<16x8xf32>
    %88 = vector.extract_strided_slice %81 {offsets = [6, 0, 0], sizes = [2, 8, 8], strides = [1, 1, 1]} : vector<8x8x8xf32> to vector<2x8x8xf32>
    %89 = vector.shape_cast %88 : vector<2x8x8xf32> to vector<16x8xf32>
    %90 = tpu.concatenate %83, %85, %87, %89 in 1 : vector<16x8xf32>, vector<16x8xf32>, vector<16x8xf32>, vector<16x8xf32> -> vector<16x32xf32>
    %cst_24 = arith.constant dense<0.000000e+00> : vector<16x32xf32>
    %91 = tpu.matmul %90, %2, %cst_24 {dimension_numbers = #tpu.dot_dimension_numbers<[1], [0], [0], [1], [0, 0, 1, 1], [], []>} : vector<16x32xf32>, vector<32x32xf32>, vector<16x32xf32> -> vector<16x32xf32>
    %92 = vector.broadcast %11 : vector<1x32xf32> to vector<16x32xf32>
    %93 = arith.addf %91, %92 : vector<16x32xf32>
    %94 = arith.addf %0, %93 : vector<16x32xf32>
    %cst_25 = arith.constant dense<0.000000e+00> : vector<16xf32>
    %95 = vector.multi_reduction <add>, %94, %cst_25 [1] : vector<16x32xf32> to vector<16xf32>
    %96 = vector.shape_cast %95 : vector<16xf32> to vector<16x1xf32>
    %cst_26 = arith.constant 3.200000e+01 : f32
    %97 = vector.broadcast %cst_26 : f32 to vector<16x1xf32>
    %98 = arith.divf %96, %97 : vector<16x1xf32>
    %99 = vector.broadcast %98 : vector<16x1xf32> to vector<16x32xf32>
    %100 = arith.subf %94, %99 : vector<16x32xf32>
    %101 = arith.mulf %100, %100 : vector<16x32xf32>
    %cst_27 = arith.constant dense<0.000000e+00> : vector<16xf32>
    %102 = vector.multi_reduction <add>, %101, %cst_27 [1] : vector<16x32xf32> to vector<16xf32>
    %103 = vector.shape_cast %102 : vector<16xf32> to vector<16x1xf32>
    %cst_28 = arith.constant 3.200000e+01 : f32
    %104 = vector.broadcast %cst_28 : f32 to vector<16x1xf32>
    %105 = arith.divf %103, %104 : vector<16x1xf32>
    %106 = vector.broadcast %98 : vector<16x1xf32> to vector<16x32xf32>
    %107 = arith.subf %94, %106 : vector<16x32xf32>
    %cst_29 = arith.constant 9.99999974E-6 : f32
    %108 = vector.broadcast %cst_29 : f32 to vector<16x1xf32>
    %109 = arith.addf %105, %108 : vector<16x1xf32>
    %110 = math.rsqrt %109 : vector<16x1xf32>
    %111 = vector.broadcast %110 : vector<16x1xf32> to vector<16x32xf32>
    %112 = arith.mulf %107, %111 : vector<16x32xf32>
    %113 = vector.broadcast %9 : vector<1x32xf32> to vector<16x32xf32>
    %114 = arith.mulf %112, %113 : vector<16x32xf32>
    %115 = vector.broadcast %10 : vector<1x32xf32> to vector<16x32xf32>
    %116 = arith.addf %114, %115 : vector<16x32xf32>
    %cst_30 = arith.constant dense<0.000000e+00> : vector<16x64xf32>
    %117 = tpu.matmul %116, %3, %cst_30 {dimension_numbers = #tpu.dot_dimension_numbers<[1], [0], [0], [1], [0, 0, 1, 1], [], []>} : vector<16x32xf32>, vector<32x64xf32>, vector<16x64xf32> -> vector<16x64xf32>
    %118 = vector.broadcast %6 : vector<1x64xf32> to vector<16x64xf32>
    %119 = arith.addf %117, %118 : vector<16x64xf32>
    %cst_31 = arith.constant 5.000000e-01 : f32
    %120 = vector.broadcast %cst_31 : f32 to vector<16x64xf32>
    %121 = arith.mulf %120, %119 : vector<16x64xf32>
    %cst_32 = arith.constant 0.707106769 : f32
    %122 = vector.broadcast %cst_32 : f32 to vector<16x64xf32>
    %123 = arith.mulf %119, %122 : vector<16x64xf32>
    %124 = math.absf %123 : vector<16x64xf32>
    %cst_33 = arith.constant 0.327591091 : f32
    %125 = vector.broadcast %cst_33 : f32 to vector<16x64xf32>
    %126 = arith.mulf %125, %124 : vector<16x64xf32>
    %cst_34 = arith.constant 1.000000e+00 : f32
    %127 = vector.broadcast %cst_34 : f32 to vector<16x64xf32>
    %128 = arith.addf %127, %126 : vector<16x64xf32>
    %cst_35 = arith.constant 1.000000e+00 : f32
    %129 = vector.broadcast %cst_35 : f32 to vector<16x64xf32>
    %130 = arith.divf %129, %128 : vector<16x64xf32>
    %cst_36 = arith.constant 1.06140542 : f32
    %131 = vector.broadcast %cst_36 : f32 to vector<16x64xf32>
    %132 = arith.mulf %130, %131 : vector<16x64xf32>
    %cst_37 = arith.constant -1.45315206 : f32
    %133 = vector.broadcast %cst_37 : f32 to vector<16x64xf32>
    %134 = arith.addf %133, %132 : vector<16x64xf32>
    %135 = arith.mulf %130, %134 : vector<16x64xf32>
    %cst_38 = arith.constant 1.42141378 : f32
    %136 = vector.broadcast %cst_38 : f32 to vector<16x64xf32>
    %137 = arith.addf %136, %135 : vector<16x64xf32>
    %138 = arith.mulf %130, %137 : vector<16x64xf32>
    %cst_39 = arith.constant -0.284496725 : f32
    %139 = vector.broadcast %cst_39 : f32 to vector<16x64xf32>
    %140 = arith.addf %139, %138 : vector<16x64xf32>
    %141 = arith.mulf %130, %140 : vector<16x64xf32>
    %cst_40 = arith.constant 0.254829586 : f32
    %142 = vector.broadcast %cst_40 : f32 to vector<16x64xf32>
    %143 = arith.addf %142, %141 : vector<16x64xf32>
    %144 = arith.mulf %130, %143 : vector<16x64xf32>
    %cst_41 = arith.constant 0.000000e+00 : f32
    %145 = vector.broadcast %cst_41 : f32 to vector<16x64xf32>
    %146 = arith.subf %145, %124 : vector<16x64xf32>
    %147 = arith.mulf %146, %124 : vector<16x64xf32>
    %148 = math.exp %147 : vector<16x64xf32>
    %149 = arith.mulf %144, %148 : vector<16x64xf32>
    %cst_42 = arith.constant 1.000000e+00 : f32
    %150 = vector.broadcast %cst_42 : f32 to vector<16x64xf32>
    %151 = arith.subf %150, %149 : vector<16x64xf32>
    %cst_43 = arith.constant 0.000000e+00 : f32
    %152 = vector.broadcast %cst_43 : f32 to vector<16x64xf32>
    %153 = arith.cmpf olt, %123, %152 : vector<16x64xf32>
    %cst_44 = arith.constant 0.000000e+00 : f32
    %154 = vector.broadcast %cst_44 : f32 to vector<16x64xf32>
    %155 = arith.subf %154, %151 : vector<16x64xf32>
    %156 = arith.select %153, %155, %151 : vector<16x64xi1>, vector<16x64xf32>
    %cst_45 = arith.constant 1.000000e+00 : f32
    %157 = vector.broadcast %cst_45 : f32 to vector<16x64xf32>
    %158 = arith.addf %157, %156 : vector<16x64xf32>
    %159 = arith.mulf %121, %158 : vector<16x64xf32>
    %cst_46 = arith.constant dense<0.000000e+00> : vector<16x32xf32>
    %160 = tpu.matmul %159, %4, %cst_46 {dimension_numbers = #tpu.dot_dimension_numbers<[1], [0], [0], [1], [0, 0, 1, 1], [], []>} : vector<16x64xf32>, vector<64x32xf32>, vector<16x32xf32> -> vector<16x32xf32>
    %161 = vector.broadcast %12 : vector<1x32xf32> to vector<16x32xf32>
    %162 = arith.addf %160, %161 : vector<16x32xf32>
    %163 = arith.addf %94, %162 : vector<16x32xf32>
    %c0_47 = arith.constant 0 : index
    %c0_48 = arith.constant 0 : index
    %164 = vector.load %arg3[%c0_47, %c0_48] : memref<16x32xf32, #tpu.memory_space<vmem>>, vector<16x32xf32>
    tpu.vector_store %arg3[%c0_47, %c0_48], %163 {strides = array<i32>} : memref<16x32xf32, #tpu.memory_space<vmem>>, vector<16x32xf32>,
    return
  }
  func.func @transform_0(%arg0: i32) -> (i32, i32) {
    %c0_i32 = arith.constant 0 : i32
    %c0_i32_0 = arith.constant 0 : i32
    %c0_i32_1 = arith.constant 0 : i32
    return %c0_i32, %c0_i32_0 : i32, i32
  }
  func.func @transform_1(%arg0: i32) -> (i32, i32) {
    %c0_i32 = arith.constant 0 : i32
    %c0_i32_0 = arith.constant 0 : i32
    %c0_i32_1 = arith.constant 0 : i32
    return %c0_i32, %c0_i32_0 : i32, i32
  }
  func.func @transform_2(%arg0: i32) -> (i32, i32) {
    %c0_i32 = arith.constant 0 : i32
    %c0_i32_0 = arith.constant 0 : i32
    %c0_i32_1 = arith.constant 0 : i32
    return %c0_i32, %c0_i32_0 : i32, i32
  }
}

</mosaic_0001>

<llo_original>
// kernel: tpu_custom_call.1
$region0: #{tpu_custom_call.1}
  #allocation0 [shape = 'u32[]', space=smem, size = 0x4, offset = 0x4, fixed_abs, tag = 'smem constant byte address 0x4 - core index']
  #allocation1 [shape = 'u32[144,128]{1,0:T(1,128)}', space=vmem, size = 0x12000, scoped, tag = 'internal scratch']
  %s0 = inlined_call_operand.hbm [shape: f32[16,32], index: 0, kind: input, shape index: {}]
  %s1 = inlined_call_operand.hbm [shape: f32[168,128], index: 1, kind: input, shape index: {}]
  %s2 = inlined_call_operand.hbm [shape: f32[16,32], index: 2, kind: output, shape index: {}]
  %s3 = sld [smem:[#allocation0]]
  $region26: #{tpu_custom_call.1} parent=0
    _
  %s5 = ssub.s32 1, %s3
  %s6 = scalar_select 0, %s5, %s3
  $region1: #{tpu_custom_call.1} parent=0
    #allocation2 [shape = 'u8[8192]{0}', space=vmem, size = 0x2000, scoped, tag = 'input window, operand 0, single buffered']
    #allocation3 [shape = 's32[1]{0}', space=sflag, size = 0x4, scoped, tag = 'scoped memory for tpu_custom_call.1']
    #allocation4 [shape = 's32[1]{0}', space=sflag, size = 0x4, scoped, tag = 'scoped memory for tpu_custom_call.1']
    #allocation5 [shape = 'u8[86016]{0}', space=vmem, size = 0x15000, scoped, tag = 'input window, operand 1, single buffered']
    #allocation6 [shape = 's32[1]{0}', space=sflag, size = 0x4, scoped, tag = 'scoped memory for tpu_custom_call.1']
    #allocation7 [shape = 'u8[8192]{0}', space=vmem, size = 0x2000, scoped, tag = 'output window, operand 0, single buffered']
    %7 = vsyncpa [#allocation3], 0
    %8 = vsyncpa [#allocation6], 0
    %9 = vsyncpa [#allocation4], 0
    // Predicated region
    $region2: #{tpu_custom_call.1} parent=1 // pred_check
      _
    $region3: #{tpu_custom_call.1} parent=1 // pred_check_branch
      %11 = sbr.rel (0) target = $region5
    $region4: #{tpu_custom_call.1} parent=1 // pred_region
      %s13 = ssub.s32 256, 256
      %14 = vsyncadd [#allocation3], %s13
      %s15 = sshll.u32 [#allocation2], 4
      %s16 = int_to_ptr.vmem [resolvable:$true] %s15
      %21 = dma.hbm_to_vmem [thread:$0]  %s0, 256, %s16, [#allocation3], 128, 128, 8
    $region5: #{tpu_custom_call.1} parent=1 // pred_fallthru
      _
    // Predicated region
    $region6: #{tpu_custom_call.1} parent=1 // pred_check
      _
    $region7: #{tpu_custom_call.1} parent=1 // pred_check_branch
      %23 = sbr.rel (0) target = $region9
    $region8: #{tpu_custom_call.1} parent=1 // pred_region
      %s25 = ssub.s32 2688, 2688
      %26 = vsyncadd [#allocation6], %s25
      %s27 = sshll.u32 [#allocation5], 4
      %s28 = int_to_ptr.vmem [resolvable:$true] %s27
      %33 = dma.hbm_to_vmem [thread:$0]  %s1, 2688, %s28, [#allocation6], 128, 128, 8
    $region9: #{tpu_custom_call.1} parent=1 // pred_fallthru
      _
    // Predicated region
    $region10: #{tpu_custom_call.1} parent=1 // pred_check
      _
    $region11: #{tpu_custom_call.1} parent=1 // pred_check_branch
      %35 = sbr.rel (0) target = $region13
    $region12: #{tpu_custom_call.1} parent=1 // pred_region
      %36 = dma.done [#allocation3], 256
    $region13: #{tpu_custom_call.1} parent=1 // pred_fallthru
      _
    // Predicated region
    $region14: #{tpu_custom_call.1} parent=1 // pred_check
      _
    $region15: #{tpu_custom_call.1} parent=1 // pred_check_branch
      %38 = sbr.rel (0) target = $region17
    $region16: #{tpu_custom_call.1} parent=1 // pred_region
      %39 = dma.done [#allocation6], 2688
    $region17: #{tpu_custom_call.1} parent=1 // pred_fallthru
      _
    %v40 = vld [vmem:[#allocation2] sm:$0xff]
    %v41 = vld [vmem:[#allocation2 + $0x8] sm:$0xff]
    %v42 = vld [vmem:[#allocation5] sm:$0xff]
    %v43 = vld [vmem:[#allocation5 + $0x8] sm:$0xff]
    %v44 = vld [vmem:[#allocation5 + $0x10] sm:$0xff]
    %v45 = vld [vmem:[#allocation5 + $0x18] sm:$0xff]
    %v46 = vld [vmem:[#allocation5 + $0x20] sm:$0xff]
    %v47 = vld [vmem:[#allocation5 + $0x28] sm:$0xff]
    %v48 = vld [vmem:[#allocation5 + $0x30] sm:$0xff]
    %v49 = vld [vmem:[#allocation5 + $0x38] sm:$0xff]
    %v50 = vld [vmem:[#allocation5 + $0x40] sm:$0xff]
    %v51 = vld [vmem:[#allocation5 + $0x48] sm:$0xff]
    %v52 = vld [vmem:[#allocation5 + $0x50] sm:$0xff]
    %v53 = vld [vmem:[#allocation5 + $0x58] sm:$0xff]
    %v54 = vld [vmem:[#allocation5 + $0x60] sm:$0xff]
    %v55 = vld [vmem:[#allocation5 + $0x68] sm:$0xff]
    %v56 = vld [vmem:[#allocation5 + $0x70] sm:$0xff]
    %v57 = vld [vmem:[#allocation5 + $0x78] sm:$0xff]
    %v58 = vld [vmem:[#allocation5 + $0x80] sm:$0xff]
    %v59 = vld [vmem:[#allocation5 + $0x88] sm:$0xff]
    %v60 = vld [vmem:[#allocation5 + $0x90] sm:$0xff]
    %v61 = vld [vmem:[#allocation5 + $0x98] sm:$0xff]
    %v62 = vld [vmem:[#allocation5 + $0xa0] sm:$0x1]
    %v63 = vld [vmem:[#allocation5 + $0xa1] sm:$0x1]
    %v64 = vld [vmem:[#allocation5 + $0xa2] sm:$0x1]
    %v65 = vld [vmem:[#allocation5 + $0xa3] sm:$0x1]
    %v66 = vld [vmem:[#allocation5 + $0xa4] sm:$0x1]
    %v67 = vld [vmem:[#allocation5 + $0xa5] sm:$0x1]
    %v68 = vld [vmem:[#allocation5 + $0xa6] sm:$0x1]
    %v69 = vld [vmem:[#allocation5 + $0xa7] sm:$0x1]
    %vm70 = vcmask 261120
    %v71 = vsel %vm70, %v40, 0.0
    %72 = vadd.xlane.f32.xlu0 %v71
    %v73 = vpop.xlane.xlu0 %72
    %v74 = vsel %vm70, %v41, 0.0
    %75 = vadd.xlane.f32.xlu0 %v74
    %v76 = vpop.xlane.xlu0 %75
    %v77 = vrcp.pop 32.0
    %v78 = vmul.f32 %v73, %v77
    %v79 = vmul.f32 %v76, %v77
    %v80 = vsub.f32 %v40, %v78
    %v81 = vsub.f32 %v41, %v79
    %v82 = vmul.f32 %v80, %v80
    %v83 = vmul.f32 %v81, %v81
    %v84 = vsel %vm70, %v82, 0.0
    %85 = vadd.xlane.f32.xlu0 %v84
    %v86 = vpop.xlane.xlu0 %85
    %v87 = vsel %vm70, %v83, 0.0
    %88 = vadd.xlane.f32.xlu0 %v87
    %v89 = vpop.xlane.xlu0 %88
    %v90 = vmul.f32 %v86, %v77
    %v91 = vmul.f32 %v89, %v77
    %v92 = vadd.f32 %v90, 1e-05
    %v93 = vadd.f32 %v91, 1e-05
    %v94 = vrsqrt.pop %v92
    %v95 = vrsqrt.pop %v93
    %v96 = vmul.f32 %v80, %v94
    %v97 = vmul.f32 %v81, %v95
    %v98 = vlaneseq
    %v99 = vshrl.u32 %v98, 7
    %v100 = vsub.s32 0, %v99
    %v101 = vrot.slane %v64, %v100
    %v102 = vmul.f32 %v96, %v101
    %v103 = vmul.f32 %v97, %v101
    %v104 = vlaneseq
    %v105 = vshrl.u32 %v104, 7
    %v106 = vsub.s32 0, %v105
    %v107 = vrot.slane %v65, %v106
    %v108 = vadd.f32 %v102, %v107
    %v109 = vadd.f32 %v103, %v107
    %v110 = vlaneseq
    %v111 = vshrl.u32 %v110, 7
    %v112 = vsub.s32 0, %v111
    %v113 = vrot.slane %v62, %v112
    %v115 = vsel %vm70, %v108, 0
    %v118 = vsel %vm70, %v109, 0
    %120 = vmatprep.subr.mxu0 0.0
    %121 = vmatpush1.msra.mxu0 %v42
    %122 = vmatprep.subr.mxu0 0.0
    %123 = vmatpush1.msra.mxu0 %v43
    %124 = vmatprep.subr.mxu0 0.0
    %125 = vmatpush1.msra.mxu0 %v44
    %126 = vmatprep.subr.mxu0 0.0
    %127 = vmatpush1.msra.mxu0 %v45
    %128 = vmatprep.subr.mxu0 0.0
    %129 = vmatpush1.msra.mxu0 0.0
    %130 = vmatprep.subr.mxu0 0.0
    %131 = vmatpush1.msra.mxu0 0.0
    %132 = vmatprep.subr.mxu0 0.0
    %133 = vmatpush1.msra.mxu0 0.0
    %134 = vmatprep.subr.mxu0 0.0
    %135 = vmatpush1.msra.mxu0 0.0
    %136 = vmatprep.subr.mxu0 0.0
    %137 = vmatpush1.msra.mxu0 0.0
    %138 = vmatprep.subr.mxu0 0.0
    %139 = vmatpush1.msra.mxu0 0.0
    %140 = vmatprep.subr.mxu0 0.0
    %141 = vmatpush1.msra.mxu0 0.0
    %142 = vmatprep.subr.mxu0 0.0
    %143 = vmatpush1.msra.mxu0 0.0
    %144 = vmatprep.subr.mxu0 0.0
    %145 = vmatpush1.msra.mxu0 0.0
    %146 = vmatprep.subr.mxu0 0.0
    %147 = vmatpush1.msra.mxu0 0.0
    %148 = vmatprep.subr.mxu0 0.0
    %149 = vmatpush1.msra.mxu0 0.0
    %150 = vmatprep.subr.mxu0 0.0
    %151 = vmatpush1.msra.mxu0 0.0
    %152 = vmatprep.subr.mxu0 0.0
    %153 = vmatpush1.msra.mxu0 0.0
    %154 = vmatprep.subr.mxu0 0.0
    %155 = vmatpush1.msra.mxu0 0.0
    %156 = vmatprep.subr.mxu0 0.0
    %157 = vmatpush1.msra.mxu0 0.0
    %158 = vmatprep.subr.mxu0 0.0
    %159 = vmatpush1.msra.mxu0 0.0
    %160 = vmatprep.subr.mxu0 0.0
    %161 = vmatpush1.msra.mxu0 0.0
    %162 = vmatprep.subr.mxu0 0.0
    %163 = vmatpush1.msra.mxu0 0.0
    %164 = vmatprep.subr.mxu0 0.0
    %165 = vmatpush1.msra.mxu0 0.0
    %166 = vmatprep.subr.mxu0 0.0
    %167 = vmatpush1.msra.mxu0 0.0
    %168 = vmatprep.subr.mxu0 0.0
    %169 = vmatpush1.msra.mxu0 0.0
    %170 = vmatprep.subr.mxu0 0.0
    %171 = vmatpush1.msra.mxu0 0.0
    %172 = vmatprep.subr.mxu0 0.0
    %173 = vmatpush1.msra.mxu0 0.0
    %174 = vmatprep.subr.mxu0 0.0
    %175 = vmatpush1.msra.mxu0 0.0
    %176 = vmatprep.subr.mxu0 0.0
    %177 = vmatpush1.msra.mxu0 0.0
    %178 = vmatprep.subr.mxu0 0.0
    %179 = vmatpush1.msra.mxu0 0.0
    %180 = vmatprep.subr.mxu0 0.0
    %181 = vmatpush1.msra.mxu0 0.0
    %182 = vmatprep.subr.mxu0 0.0
    %183 = vmatpush1.msra.mxu0 0.0
    %184 = vmatprep.mubr.f32.mxu0 0.0
    %185 = vmatmul.mubr.f32.gmra.mrb[0].mxu0 %v115
    %v186 = vpop.f32.mrb[0].mxu0
    %v187 = vadd.f32 %v113, %v186
    %v188 = vpop.f32.mrb[0].mxu0
    %189 = vmatprep.mubr.f32.mxu0 0.0
    %190 = vmatmul.mubr.f32.gmra.mrb[0].mxu0 %v118
    %v191 = vpop.f32.mrb[0].mxu0
    %v192 = vadd.f32 %v113, %v191
    %v193 = vpop.f32.mrb[0].mxu0
    %194 = vdwg.mxu0
    %197 = vrot.lane.b32.xlu0 %v187, 120
    %v198 = vpop.permute.xlu0 %197
    %199 = vrot.lane.b32.xlu0 %v192, 120
    %v200 = vpop.permute.xlu0 %199
    %201 = vrot.lane.b32.xlu0 %v187, 112
    %v202 = vpop.permute.xlu0 %201
    %203 = vrot.lane.b32.xlu0 %v192, 112
    %v204 = vpop.permute.xlu0 %203
    %205 = vrot.lane.b32.xlu0 %v187, 104
    %v206 = vpop.permute.xlu0 %205
    %207 = vrot.lane.b32.xlu0 %v192, 104
    %v208 = vpop.permute.xlu0 %207
    %209 = vrot.lane.b32.xlu0 %v187, 96
    %v210 = vpop.permute.xlu0 %209
    %vm211 = vcmask 64512
    %v212 = vsel %vm211, %v187, 0
    %v214 = vsel %vm211, %v210, 0
    %216 = vmatprep.subr.mxu0 0.0
    %217 = vmatpush1.xpose.msra.mxu0 %v214
    %218 = vmatprep.subr.mxu0 0.0
    %219 = vmatpush1.xpose.msra.mxu0 0.0
    %220 = vmatprep.subr.mxu0 0.0
    %221 = vmatpush1.xpose.msra.mxu0 0.0
    %222 = vmatprep.subr.mxu0 0.0
    %223 = vmatpush1.xpose.msra.mxu0 0.0
    %224 = vmatprep.subr.mxu0 0.0
    %225 = vmatpush1.xpose.msra.mxu0 0.0
    %226 = vmatprep.subr.mxu0 0.0
    %227 = vmatpush1.xpose.msra.mxu0 0.0
    %228 = vmatprep.subr.mxu0 0.0
    %229 = vmatpush1.xpose.msra.mxu0 0.0
    %230 = vmatprep.subr.mxu0 0.0
    %231 = vmatpush1.xpose.msra.mxu0 0.0
    %232 = vmatprep.subr.mxu0 0.0
    %233 = vmatpush1.xpose.msra.mxu0 0.0
    %234 = vmatprep.subr.mxu0 0.0
    %235 = vmatpush1.xpose.msra.mxu0 0.0
    %236 = vmatprep.subr.mxu0 0.0
    %237 = vmatpush1.xpose.msra.mxu0 0.0
    %238 = vmatprep.subr.mxu0 0.0
    %239 = vmatpush1.xpose.msra.mxu0 0.0
    %240 = vmatprep.subr.mxu0 0.0
    %241 = vmatpush1.xpose.msra.mxu0 0.0
    %242 = vmatprep.subr.mxu0 0.0
    %243 = vmatpush1.xpose.msra.mxu0 0.0
    %244 = vmatprep.subr.mxu0 0.0
    %245 = vmatpush1.xpose.msra.mxu0 0.0
    %246 = vmatprep.subr.mxu0 0.0
    %247 = vmatpush1.xpose.msra.mxu0 0.0
    %248 = vmatprep.subr.mxu0 0.0
    %249 = vmatpush1.xpose.msra.mxu0 0.0
    %250 = vmatprep.subr.mxu0 0.0
    %251 = vmatpush1.xpose.msra.mxu0 0.0
    %252 = vmatprep.subr.mxu0 0.0
    %253 = vmatpush1.xpose.msra.mxu0 0.0
    %254 = vmatprep.subr.mxu0 0.0
    %255 = vmatpush1.xpose.msra.mxu0 0.0
    %256 = vmatprep.subr.mxu0 0.0
    %257 = vmatpush1.xpose.msra.mxu0 0.0
    %258 = vmatprep.subr.mxu0 0.0
    %259 = vmatpush1.xpose.msra.mxu0 0.0
    %260 = vmatprep.subr.mxu0 0.0
    %261 = vmatpush1.xpose.msra.mxu0 0.0
    %262 = vmatprep.subr.mxu0 0.0
    %263 = vmatpush1.xpose.msra.mxu0 0.0
    %264 = vmatprep.subr.mxu0 0.0
    %265 = vmatpush1.xpose.msra.mxu0 0.0
    %266 = vmatprep.subr.mxu0 0.0
    %267 = vmatpush1.xpose.msra.mxu0 0.0
    %268 = vmatprep.subr.mxu0 0.0
    %269 = vmatpush1.xpose.msra.mxu0 0.0
    %270 = vmatprep.subr.mxu0 0.0
    %271 = vmatpush1.xpose.msra.mxu0 0.0
    %272 = vmatprep.subr.mxu0 0.0
    %273 = vmatpush1.xpose.msra.mxu0 0.0
    %274 = vmatprep.subr.mxu0 0.0
    %275 = vmatpush1.xpose.msra.mxu0 0.0
    %276 = vmatprep.subr.mxu0 0.0
    %277 = vmatpush1.xpose.msra.mxu0 0.0
    %278 = vmatprep.subr.mxu0 0.0
    %279 = vmatpush1.xpose.msra.mxu0 0.0
    %280 = vmatprep.mubr.f32.mxu0 0.0
    %281 = vmatmul.mubr.f32.gmra.mrb[0].mxu0 %v212
    %v282 = vpop.f32.mrb[0].mxu0
    %v283 = vadd.f32 0.0, %v282
    %v284 = vpop.f32.mrb[0].mxu0
    %285 = vdwg.mxu0
    %286 = vrot.lane.b32.xlu0 %v192, 96
    %v287 = vpop.permute.xlu0 %286
    %v288 = vsel %vm211, %v192, 0
    %v290 = vsel %vm211, %v287, 0
    %292 = vmatprep.subr.mxu0 0.0
    %293 = vmatpush1.xpose.msra.mxu0 %v290
    %294 = vmatprep.subr.mxu0 0.0
    %295 = vmatpush1.xpose.msra.mxu0 0.0
    %296 = vmatprep.subr.mxu0 0.0
    %297 = vmatpush1.xpose.msra.mxu0 0.0
    %298 = vmatprep.subr.mxu0 0.0
    %299 = vmatpush1.xpose.msra.mxu0 0.0
    %300 = vmatprep.subr.mxu0 0.0
    %301 = vmatpush1.xpose.msra.mxu0 0.0
    %302 = vmatprep.subr.mxu0 0.0
    %303 = vmatpush1.xpose.msra.mxu0 0.0
    %304 = vmatprep.subr.mxu0 0.0
    %305 = vmatpush1.xpose.msra.mxu0 0.0
    %306 = vmatprep.subr.mxu0 0.0
    %307 = vmatpush1.xpose.msra.mxu0 0.0
    %308 = vmatprep.subr.mxu0 0.0
    %309 = vmatpush1.xpose.msra.mxu0 0.0
    %310 = vmatprep.subr.mxu0 0.0
    %311 = vmatpush1.xpose.msra.mxu0 0.0
    %312 = vmatprep.subr.mxu0 0.0
    %313 = vmatpush1.xpose.msra.mxu0 0.0
    %314 = vmatprep.subr.mxu0 0.0
    %315 = vmatpush1.xpose.msra.mxu0 0.0
    %316 = vmatprep.subr.mxu0 0.0
    %317 = vmatpush1.xpose.msra.mxu0 0.0
    %318 = vmatprep.subr.mxu0 0.0
    %319 = vmatpush1.xpose.msra.mxu0 0.0
    %320 = vmatprep.subr.mxu0 0.0
    %321 = vmatpush1.xpose.msra.mxu0 0.0
    %322 = vmatprep.subr.mxu0 0.0
    %323 = vmatpush1.xpose.msra.mxu0 0.0
    %324 = vmatprep.subr.mxu0 0.0
    %325 = vmatpush1.xpose.msra.mxu0 0.0
    %326 = vmatprep.subr.mxu0 0.0
    %327 = vmatpush1.xpose.msra.mxu0 0.0
    %328 = vmatprep.subr.mxu0 0.0
    %329 = vmatpush1.xpose.msra.mxu0 0.0
    %330 = vmatprep.subr.mxu0 0.0
    %331 = vmatpush1.xpose.msra.mxu0 0.0
    %332 = vmatprep.subr.mxu0 0.0
    %333 = vmatpush1.xpose.msra.mxu0 0.0
    %334 = vmatprep.subr.mxu0 0.0
    %335 = vmatpush1.xpose.msra.mxu0 0.0
    %336 = vmatprep.subr.mxu0 0.0
    %337 = vmatpush1.xpose.msra.mxu0 0.0
    %338 = vmatprep.subr.mxu0 0.0
    %339 = vmatpush1.xpose.msra.mxu0 0.0
    %340 = vmatprep.subr.mxu0 0.0
    %341 = vmatpush1.xpose.msra.mxu0 0.0
    %342 = vmatprep.subr.mxu0 0.0
    %343 = vmatpush1.xpose.msra.mxu0 0.0
    %344 = vmatprep.subr.mxu0 0.0
    %345 = vmatpush1.xpose.msra.mxu0 0.0
    %346 = vmatprep.subr.mxu0 0.0
    %347 = vmatpush1.xpose.msra.mxu0 0.0
    %348 = vmatprep.subr.mxu0 0.0
    %349 = vmatpush1.xpose.msra.mxu0 0.0
    %350 = vmatprep.subr.mxu0 0.0
    %351 = vmatpush1.xpose.msra.mxu0 0.0
    %352 = vmatprep.subr.mxu0 0.0
    %353 = vmatpush1.xpose.msra.mxu0 0.0
    %354 = vmatprep.subr.mxu0 0.0
    %355 = vmatpush1.xpose.msra.mxu0 0.0
    %356 = vmatprep.mubr.f32.mxu0 0.0
    %357 = vmatmul.mubr.f32.gmra.mrb[0].mxu0 %v288
    %v358 = vpop.f32.mrb[0].mxu0
    %v359 = vadd.f32 0.0, %v358
    %v360 = vpop.f32.mrb[0].mxu0
    %361 = vdwg.mxu0
    %362 = vrot.lane.b32.xlu0 %v198, 96
    %v363 = vpop.permute.xlu0 %362
    %v364 = vsel %vm211, %v198, 0
    %v366 = vsel %vm211, %v363, 0
    %368 = vmatprep.subr.mxu0 0.0
    %369 = vmatpush1.xpose.msra.mxu0 %v366
    %370 = vmatprep.subr.mxu0 0.0
    %371 = vmatpush1.xpose.msra.mxu0 0.0
    %372 = vmatprep.subr.mxu0 0.0
    %373 = vmatpush1.xpose.msra.mxu0 0.0
    %374 = vmatprep.subr.mxu0 0.0
    %375 = vmatpush1.xpose.msra.mxu0 0.0
    %376 = vmatprep.subr.mxu0 0.0
    %377 = vmatpush1.xpose.msra.mxu0 0.0
    %378 = vmatprep.subr.mxu0 0.0
    %379 = vmatpush1.xpose.msra.mxu0 0.0
    %380 = vmatprep.subr.mxu0 0.0
    %381 = vmatpush1.xpose.msra.mxu0 0.0
    %382 = vmatprep.subr.mxu0 0.0
    %383 = vmatpush1.xpose.msra.mxu0 0.0
    %384 = vmatprep.subr.mxu0 0.0
    %385 = vmatpush1.xpose.msra.mxu0 0.0
    %386 = vmatprep.subr.mxu0 0.0
    %387 = vmatpush1.xpose.msra.mxu0 0.0
    %388 = vmatprep.subr.mxu0 0.0
    %389 = vmatpush1.xpose.msra.mxu0 0.0
    %390 = vmatprep.subr.mxu0 0.0
    %391 = vmatpush1.xpose.msra.mxu0 0.0
    %392 = vmatprep.subr.mxu0 0.0
    %393 = vmatpush1.xpose.msra.mxu0 0.0
    %394 = vmatprep.subr.mxu0 0.0
    %395 = vmatpush1.xpose.msra.mxu0 0.0
    %396 = vmatprep.subr.mxu0 0.0
    %397 = vmatpush1.xpose.msra.mxu0 0.0
    %398 = vmatprep.subr.mxu0 0.0
    %399 = vmatpush1.xpose.msra.mxu0 0.0
    %400 = vmatprep.subr.mxu0 0.0
    %401 = vmatpush1.xpose.msra.mxu0 0.0
    %402 = vmatprep.subr.mxu0 0.0
    %403 = vmatpush1.xpose.msra.mxu0 0.0
    %404 = vmatprep.subr.mxu0 0.0
    %405 = vmatpush1.xpose.msra.mxu0 0.0
    %406 = vmatprep.subr.mxu0 0.0
    %407 = vmatpush1.xpose.msra.mxu0 0.0
    %408 = vmatprep.subr.mxu0 0.0
    %409 = vmatpush1.xpose.msra.mxu0 0.0
    %410 = vmatprep.subr.mxu0 0.0
    %411 = vmatpush1.xpose.msra.mxu0 0.0
    %412 = vmatprep.subr.mxu0 0.0
    %413 = vmatpush1.xpose.msra.mxu0 0.0
    %414 = vmatprep.subr.mxu0 0.0
    %415 = vmatpush1.xpose.msra.mxu0 0.0
    %416 = vmatprep.subr.mxu0 0.0
    %417 = vmatpush1.xpose.msra.mxu0 0.0
    %418 = vmatprep.subr.mxu0 0.0
    %419 = vmatpush1.xpose.msra.mxu0 0.0
    %420 = vmatprep.subr.mxu0 0.0
    %421 = vmatpush1.xpose.msra.mxu0 0.0
    %422 = vmatprep.subr.mxu0 0.0
    %423 = vmatpush1.xpose.msra.mxu0 0.0
    %424 = vmatprep.subr.mxu0 0.0
    %425 = vmatpush1.xpose.msra.mxu0 0.0
    %426 = vmatprep.subr.mxu0 0.0
    %427 = vmatpush1.xpose.msra.mxu0 0.0
    %428 = vmatprep.subr.mxu0 0.0
    %429 = vmatpush1.xpose.msra.mxu0 0.0
    %430 = vmatprep.subr.mxu0 0.0
    %431 = vmatpush1.xpose.msra.mxu0 0.0
    %432 = vmatprep.mubr.f32.mxu0 0.0
    %433 = vmatmul.mubr.f32.gmra.mrb[0].mxu0 %v364
    %v434 = vpop.f32.mrb[0].mxu0
    %v435 = vadd.f32 0.0, %v434
    %v436 = vpop.f32.mrb[0].mxu0
    %437 = vdwg.mxu0
    %438 = vrot.lane.b32.xlu0 %v200, 96
    %v439 = vpop.permute.xlu0 %438
    %v440 = vsel %vm211, %v200, 0
    %v442 = vsel %vm211, %v439, 0
    %444 = vmatprep.subr.mxu0 0.0
    %445 = vmatpush1.xpose.msra.mxu0 %v442
    %446 = vmatprep.subr.mxu0 0.0
    %447 = vmatpush1.xpose.msra.mxu0 0.0
    %448 = vmatprep.subr.mxu0 0.0
    %449 = vmatpush1.xpose.msra.mxu0 0.0
    %450 = vmatprep.subr.mxu0 0.0
    %451 = vmatpush1.xpose.msra.mxu0 0.0
    %452 = vmatprep.subr.mxu0 0.0
    %453 = vmatpush1.xpose.msra.mxu0 0.0
    %454 = vmatprep.subr.mxu0 0.0
    %455 = vmatpush1.xpose.msra.mxu0 0.0
    %456 = vmatprep.subr.mxu0 0.0
    %457 = vmatpush1.xpose.msra.mxu0 0.0
    %458 = vmatprep.subr.mxu0 0.0
    %459 = vmatpush1.xpose.msra.mxu0 0.0
    %460 = vmatprep.subr.mxu0 0.0
    %461 = vmatpush1.xpose.msra.mxu0 0.0
    %462 = vmatprep.subr.mxu0 0.0
    %463 = vmatpush1.xpose.msra.mxu0 0.0
    %464 = vmatprep.subr.mxu0 0.0
    %465 = vmatpush1.xpose.msra.mxu0 0.0
    %466 = vmatprep.subr.mxu0 0.0
    %467 = vmatpush1.xpose.msra.mxu0 0.0
    %468 = vmatprep.subr.mxu0 0.0
    %469 = vmatpush1.xpose.msra.mxu0 0.0
    %470 = vmatprep.subr.mxu0 0.0
    %471 = vmatpush1.xpose.msra.mxu0 0.0
    %472 = vmatprep.subr.mxu0 0.0
    %473 = vmatpush1.xpose.msra.mxu0 0.0
    %474 = vmatprep.subr.mxu0 0.0
    %475 = vmatpush1.xpose.msra.mxu0 0.0
    %476 = vmatprep.subr.mxu0 0.0
    %477 = vmatpush1.xpose.msra.mxu0 0.0
    %478 = vmatprep.subr.mxu0 0.0
    %479 = vmatpush1.xpose.msra.mxu0 0.0
    %480 = vmatprep.subr.mxu0 0.0
    %481 = vmatpush1.xpose.msra.mxu0 0.0
    %482 = vmatprep.subr.mxu0 0.0
    %483 = vmatpush1.xpose.msra.mxu0 0.0
    %484 = vmatprep.subr.mxu0 0.0
    %485 = vmatpush1.xpose.msra.mxu0 0.0
    %486 = vmatprep.subr.mxu0 0.0
    %487 = vmatpush1.xpose.msra.mxu0 0.0
    %488 = vmatprep.subr.mxu0 0.0
    %489 = vmatpush1.xpose.msra.mxu0 0.0
    %490 = vmatprep.subr.mxu0 0.0
    %491 = vmatpush1.xpose.msra.mxu0 0.0
    %492 = vmatprep.subr.mxu0 0.0
    %493 = vmatpush1.xpose.msra.mxu0 0.0
    %494 = vmatprep.subr.mxu0 0.0
    %495 = vmatpush1.xpose.msra.mxu0 0.0
    %496 = vmatprep.subr.mxu0 0.0
    %497 = vmatpush1.xpose.msra.mxu0 0.0
    %498 = vmatprep.subr.mxu0 0.0
    %499 = vmatpush1.xpose.msra.mxu0 0.0
    %500 = vmatprep.subr.mxu0 0.0
    %501 = vmatpush1.xpose.msra.mxu0 0.0
    %502 = vmatprep.subr.mxu0 0.0
    %503 = vmatpush1.xpose.msra.mxu0 0.0
    %504 = vmatprep.subr.mxu0 0.0
    %505 = vmatpush1.xpose.msra.mxu0 0.0
    %506 = vmatprep.subr.mxu0 0.0
    %507 = vmatpush1.xpose.msra.mxu0 0.0
    %508 = vmatprep.mubr.f32.mxu0 0.0
    %509 = vmatmul.mubr.f32.gmra.mrb[0].mxu0 %v440
    %v510 = vpop.f32.mrb[0].mxu0
    %v511 = vadd.f32 0.0, %v510
    %v512 = vpop.f32.mrb[0].mxu0
    %513 = vdwg.mxu0
    %514 = vrot.lane.b32.xlu0 %v202, 96
    %v515 = vpop.permute.xlu0 %514
    %v516 = vsel %vm211, %v202, 0
    %v518 = vsel %vm211, %v515, 0
    %520 = vmatprep.subr.mxu0 0.0
    %521 = vmatpush1.xpose.msra.mxu0 %v518
    %522 = vmatprep.subr.mxu0 0.0
    %523 = vmatpush1.xpose.msra.mxu0 0.0
    %524 = vmatprep.subr.mxu0 0.0
    %525 = vmatpush1.xpose.msra.mxu0 0.0
    %526 = vmatprep.subr.mxu0 0.0
    %527 = vmatpush1.xpose.msra.mxu0 0.0
    %528 = vmatprep.subr.mxu0 0.0
    %529 = vmatpush1.xpose.msra.mxu0 0.0
    %530 = vmatprep.subr.mxu0 0.0
    %531 = vmatpush1.xpose.msra.mxu0 0.0
    %532 = vmatprep.subr.mxu0 0.0
    %533 = vmatpush1.xpose.msra.mxu0 0.0
    %534 = vmatprep.subr.mxu0 0.0
    %535 = vmatpush1.xpose.msra.mxu0 0.0
    %536 = vmatprep.subr.mxu0 0.0
    %537 = vmatpush1.xpose.msra.mxu0 0.0
    %538 = vmatprep.subr.mxu0 0.0
    %539 = vmatpush1.xpose.msra.mxu0 0.0
    %540 = vmatprep.subr.mxu0 0.0
    %541 = vmatpush1.xpose.msra.mxu0 0.0
    %542 = vmatprep.subr.mxu0 0.0
    %543 = vmatpush1.xpose.msra.mxu0 0.0
    %544 = vmatprep.subr.mxu0 0.0
    %545 = vmatpush1.xpose.msra.mxu0 0.0
    %546 = vmatprep.subr.mxu0 0.0
    %547 = vmatpush1.xpose.msra.mxu0 0.0
    %548 = vmatprep.subr.mxu0 0.0
    %549 = vmatpush1.xpose.msra.mxu0 0.0
    %550 = vmatprep.subr.mxu0 0.0
    %551 = vmatpush1.xpose.msra.mxu0 0.0
    %552 = vmatprep.subr.mxu0 0.0
    %553 = vmatpush1.xpose.msra.mxu0 0.0
    %554 = vmatprep.subr.mxu0 0.0
    %555 = vmatpush1.xpose.msra.mxu0 0.0
    %556 = vmatprep.subr.mxu0 0.0
    %557 = vmatpush1.xpose.msra.mxu0 0.0
    %558 = vmatprep.subr.mxu0 0.0
    %559 = vmatpush1.xpose.msra.mxu0 0.0
    %560 = vmatprep.subr.mxu0 0.0
    %561 = vmatpush1.xpose.msra.mxu0 0.0
    %562 = vmatprep.subr.mxu0 0.0
    %563 = vmatpush1.xpose.msra.mxu0 0.0
    %564 = vmatprep.subr.mxu0 0.0
    %565 = vmatpush1.xpose.msra.mxu0 0.0
    %566 = vmatprep.subr.mxu0 0.0
    %567 = vmatpush1.xpose.msra.mxu0 0.0
    %568 = vmatprep.subr.mxu0 0.0
    %569 = vmatpush1.xpose.msra.mxu0 0.0
    %570 = vmatprep.subr.mxu0 0.0
    %571 = vmatpush1.xpose.msra.mxu0 0.0
    %572 = vmatprep.subr.mxu0 0.0
    %573 = vmatpush1.xpose.msra.mxu0 0.0
    %574 = vmatprep.subr.mxu0 0.0
    %575 = vmatpush1.xpose.msra.mxu0 0.0
    %576 = vmatprep.subr.mxu0 0.0
    %577 = vmatpush1.xpose.msra.mxu0 0.0
    %578 = vmatprep.subr.mxu0 0.0
    %579 = vmatpush1.xpose.msra.mxu0 0.0
    %580 = vmatprep.subr.mxu0 0.0
    %581 = vmatpush1.xpose.msra.mxu0 0.0
    %582 = vmatprep.subr.mxu0 0.0
    %583 = vmatpush1.xpose.msra.mxu0 0.0
    %584 = vmatprep.mubr.f32.mxu0 0.0
    %585 = vmatmul.mubr.f32.gmra.mrb[0].mxu0 %v516
    %v586 = vpop.f32.mrb[0].mxu0
    %v587 = vadd.f32 0.0, %v586
    %v588 = vpop.f32.mrb[0].mxu0
    %589 = vdwg.mxu0
    %590 = vrot.lane.b32.xlu0 %v204, 96
    %v591 = vpop.permute.xlu0 %590
    %v592 = vsel %vm211, %v204, 0
    %v594 = vsel %vm211, %v591, 0
    %596 = vmatprep.subr.mxu0 0.0
    %597 = vmatpush1.xpose.msra.mxu0 %v594
    %598 = vmatprep.subr.mxu0 0.0
    %599 = vmatpush1.xpose.msra.mxu0 0.0
    %600 = vmatprep.subr.mxu0 0.0
    %601 = vmatpush1.xpose.msra.mxu0 0.0
    %602 = vmatprep.subr.mxu0 0.0
    %603 = vmatpush1.xpose.msra.mxu0 0.0
    %604 = vmatprep.subr.mxu0 0.0
    %605 = vmatpush1.xpose.msra.mxu0 0.0
    %606 = vmatprep.subr.mxu0 0.0
    %607 = vmatpush1.xpose.msra.mxu0 0.0
    %608 = vmatprep.subr.mxu0 0.0
    %609 = vmatpush1.xpose.msra.mxu0 0.0
    %610 = vmatprep.subr.mxu0 0.0
    %611 = vmatpush1.xpose.msra.mxu0 0.0
    %612 = vmatprep.subr.mxu0 0.0
    %613 = vmatpush1.xpose.msra.mxu0 0.0
    %614 = vmatprep.subr.mxu0 0.0
    %615 = vmatpush1.xpose.msra.mxu0 0.0
    %616 = vmatprep.subr.mxu0 0.0
    %617 = vmatpush1.xpose.msra.mxu0 0.0
    %618 = vmatprep.subr.mxu0 0.0
    %619 = vmatpush1.xpose.msra.mxu0 0.0
    %620 = vmatprep.subr.mxu0 0.0
    %621 = vmatpush1.xpose.msra.mxu0 0.0
    %622 = vmatprep.subr.mxu0 0.0
    %623 = vmatpush1.xpose.msra.mxu0 0.0
    %624 = vmatprep.subr.mxu0 0.0
    %625 = vmatpush1.xpose.msra.mxu0 0.0
    %626 = vmatprep.subr.mxu0 0.0
    %627 = vmatpush1.xpose.msra.mxu0 0.0
    %628 = vmatprep.subr.mxu0 0.0
    %629 = vmatpush1.xpose.msra.mxu0 0.0
    %630 = vmatprep.subr.mxu0 0.0
    %631 = vmatpush1.xpose.msra.mxu0 0.0
    %632 = vmatprep.subr.mxu0 0.0
    %633 = vmatpush1.xpose.msra.mxu0 0.0
    %634 = vmatprep.subr.mxu0 0.0
    %635 = vmatpush1.xpose.msra.mxu0 0.0
    %636 = vmatprep.subr.mxu0 0.0
    %637 = vmatpush1.xpose.msra.mxu0 0.0
    %638 = vmatprep.subr.mxu0 0.0
    %639 = vmatpush1.xpose.msra.mxu0 0.0
    %640 = vmatprep.subr.mxu0 0.0
    %641 = vmatpush1.xpose.msra.mxu0 0.0
    %642 = vmatprep.subr.mxu0 0.0
    %643 = vmatpush1.xpose.msra.mxu0 0.0
    %644 = vmatprep.subr.mxu0 0.0
    %645 = vmatpush1.xpose.msra.mxu0 0.0
    %646 = vmatprep.subr.mxu0 0.0
    %647 = vmatpush1.xpose.msra.mxu0 0.0
    %648 = vmatprep.subr.mxu0 0.0
    %649 = vmatpush1.xpose.msra.mxu0 0.0
    %650 = vmatprep.subr.mxu0 0.0
    %651 = vmatpush1.xpose.msra.mxu0 0.0
    %652 = vmatprep.subr.mxu0 0.0
    %653 = vmatpush1.xpose.msra.mxu0 0.0
    %654 = vmatprep.subr.mxu0 0.0
    %655 = vmatpush1.xpose.msra.mxu0 0.0
    %656 = vmatprep.subr.mxu0 0.0
    %657 = vmatpush1.xpose.msra.mxu0 0.0
    %658 = vmatprep.subr.mxu0 0.0
    %659 = vmatpush1.xpose.msra.mxu0 0.0
    %660 = vmatprep.mubr.f32.mxu0 0.0
    %661 = vmatmul.mubr.f32.gmra.mrb[0].mxu0 %v592
    %v662 = vpop.f32.mrb[0].mxu0
    %v663 = vadd.f32 0.0, %v662
    %v664 = vpop.f32.mrb[0].mxu0
    %665 = vdwg.mxu0
    %666 = vrot.lane.b32.xlu0 %v206, 96
    %v667 = vpop.permute.xlu0 %666
    %v668 = vsel %vm211, %v206, 0
    %v670 = vsel %vm211, %v667, 0
    %672 = vmatprep.subr.mxu0 0.0
    %673 = vmatpush1.xpose.msra.mxu0 %v670
    %674 = vmatprep.subr.mxu0 0.0
    %675 = vmatpush1.xpose.msra.mxu0 0.0
    %676 = vmatprep.subr.mxu0 0.0
    %677 = vmatpush1.xpose.msra.mxu0 0.0
    %678 = vmatprep.subr.mxu0 0.0
    %679 = vmatpush1.xpose.msra.mxu0 0.0
    %680 = vmatprep.subr.mxu0 0.0
    %681 = vmatpush1.xpose.msra.mxu0 0.0
    %682 = vmatprep.subr.mxu0 0.0
    %683 = vmatpush1.xpose.msra.mxu0 0.0
    %684 = vmatprep.subr.mxu0 0.0
    %685 = vmatpush1.xpose.msra.mxu0 0.0
    %686 = vmatprep.subr.mxu0 0.0
    %687 = vmatpush1.xpose.msra.mxu0 0.0
    %688 = vmatprep.subr.mxu0 0.0
    %689 = vmatpush1.xpose.msra.mxu0 0.0
    %690 = vmatprep.subr.mxu0 0.0
    %691 = vmatpush1.xpose.msra.mxu0 0.0
    %692 = vmatprep.subr.mxu0 0.0
    %693 = vmatpush1.xpose.msra.mxu0 0.0
    %694 = vmatprep.subr.mxu0 0.0
    %695 = vmatpush1.xpose.msra.mxu0 0.0
    %696 = vmatprep.subr.mxu0 0.0
    %697 = vmatpush1.xpose.msra.mxu0 0.0
    %698 = vmatprep.subr.mxu0 0.0
    %699 = vmatpush1.xpose.msra.mxu0 0.0
    %700 = vmatprep.subr.mxu0 0.0
    %701 = vmatpush1.xpose.msra.mxu0 0.0
    %702 = vmatprep.subr.mxu0 0.0
    %703 = vmatpush1.xpose.msra.mxu0 0.0
    %704 = vmatprep.subr.mxu0 0.0
    %705 = vmatpush1.xpose.msra.mxu0 0.0
    %706 = vmatprep.subr.mxu0 0.0
    %707 = vmatpush1.xpose.msra.mxu0 0.0
    %708 = vmatprep.subr.mxu0 0.0
    %709 = vmatpush1.xpose.msra.mxu0 0.0
    %710 = vmatprep.subr.mxu0 0.0
    %711 = vmatpush1.xpose.msra.mxu0 0.0
    %712 = vmatprep.subr.mxu0 0.0
    %713 = vmatpush1.xpose.msra.mxu0 0.0
    %714 = vmatprep.subr.mxu0 0.0
    %715 = vmatpush1.xpose.msra.mxu0 0.0
    %716 = vmatprep.subr.mxu0 0.0
    %717 = vmatpush1.xpose.msra.mxu0 0.0
    %718 = vmatprep.subr.mxu0 0.0
    %719 = vmatpush1.xpose.msra.mxu0 0.0
    %720 = vmatprep.subr.mxu0 0.0
    %721 = vmatpush1.xpose.msra.mxu0 0.0
    %722 = vmatprep.subr.mxu0 0.0
    %723 = vmatpush1.xpose.msra.mxu0 0.0
    %724 = vmatprep.subr.mxu0 0.0
    %725 = vmatpush1.xpose.msra.mxu0 0.0
    %726 = vmatprep.subr.mxu0 0.0
    %727 = vmatpush1.xpose.msra.mxu0 0.0
    %728 = vmatprep.subr.mxu0 0.0
    %729 = vmatpush1.xpose.msra.mxu0 0.0
    %730 = vmatprep.subr.mxu0 0.0
    %731 = vmatpush1.xpose.msra.mxu0 0.0
    %732 = vmatprep.subr.mxu0 0.0
    %733 = vmatpush1.xpose.msra.mxu0 0.0
    %734 = vmatprep.subr.mxu0 0.0
    %735 = vmatpush1.xpose.msra.mxu0 0.0
    %736 = vmatprep.mubr.f32.mxu0 0.0
    %737 = vmatmul.mubr.f32.gmra.mrb[0].mxu0 %v668
    %v738 = vpop.f32.mrb[0].mxu0
    %v739 = vadd.f32 0.0, %v738
    %v740 = vpop.f32.mrb[0].mxu0
    %741 = vdwg.mxu0
    %742 = vrot.lane.b32.xlu0 %v208, 96
    %v743 = vpop.permute.xlu0 %742
    %v744 = vsel %vm211, %v208, 0
    %v746 = vsel %vm211, %v743, 0
    %748 = vmatprep.subr.mxu0 0.0
    %749 = vmatpush1.xpose.msra.mxu0 %v746
    %750 = vmatprep.subr.mxu0 0.0
    %751 = vmatpush1.xpose.msra.mxu0 0.0
    %752 = vmatprep.subr.mxu0 0.0
    %753 = vmatpush1.xpose.msra.mxu0 0.0
    %754 = vmatprep.subr.mxu0 0.0
    %755 = vmatpush1.xpose.msra.mxu0 0.0
    %756 = vmatprep.subr.mxu0 0.0
    %757 = vmatpush1.xpose.msra.mxu0 0.0
    %758 = vmatprep.subr.mxu0 0.0
    %759 = vmatpush1.xpose.msra.mxu0 0.0
    %760 = vmatprep.subr.mxu0 0.0
    %761 = vmatpush1.xpose.msra.mxu0 0.0
    %762 = vmatprep.subr.mxu0 0.0
    %763 = vmatpush1.xpose.msra.mxu0 0.0
    %764 = vmatprep.subr.mxu0 0.0
    %765 = vmatpush1.xpose.msra.mxu0 0.0
    %766 = vmatprep.subr.mxu0 0.0
    %767 = vmatpush1.xpose.msra.mxu0 0.0
    %768 = vmatprep.subr.mxu0 0.0
    %769 = vmatpush1.xpose.msra.mxu0 0.0
    %770 = vmatprep.subr.mxu0 0.0
    %771 = vmatpush1.xpose.msra.mxu0 0.0
    %772 = vmatprep.subr.mxu0 0.0
    %773 = vmatpush1.xpose.msra.mxu0 0.0
    %774 = vmatprep.subr.mxu0 0.0
    %775 = vmatpush1.xpose.msra.mxu0 0.0
    %776 = vmatprep.subr.mxu0 0.0
    %777 = vmatpush1.xpose.msra.mxu0 0.0
    %778 = vmatprep.subr.mxu0 0.0
    %779 = vmatpush1.xpose.msra.mxu0 0.0
    %780 = vmatprep.subr.mxu0 0.0
    %781 = vmatpush1.xpose.msra.mxu0 0.0
    %782 = vmatprep.subr.mxu0 0.0
    %783 = vmatpush1.xpose.msra.mxu0 0.0
    %784 = vmatprep.subr.mxu0 0.0
    %785 = vmatpush1.xpose.msra.mxu0 0.0
    %786 = vmatprep.subr.mxu0 0.0
    %787 = vmatpush1.xpose.msra.mxu0 0.0
    %788 = vmatprep.subr.mxu0 0.0
    %789 = vmatpush1.xpose.msra.mxu0 0.0
    %790 = vmatprep.subr.mxu0 0.0
    %791 = vmatpush1.xpose.msra.mxu0 0.0
    %792 = vmatprep.subr.mxu0 0.0
    %793 = vmatpush1.xpose.msra.mxu0 0.0
    %794 = vmatprep.subr.mxu0 0.0
    %795 = vmatpush1.xpose.msra.mxu0 0.0
    %796 = vmatprep.subr.mxu0 0.0
    %797 = vmatpush1.xpose.msra.mxu0 0.0
    %798 = vmatprep.subr.mxu0 0.0
    %799 = vmatpush1.xpose.msra.mxu0 0.0
    %800 = vmatprep.subr.mxu0 0.0
    %801 = vmatpush1.xpose.msra.mxu0 0.0
    %802 = vmatprep.subr.mxu0 0.0
    %803 = vmatpush1.xpose.msra.mxu0 0.0
    %804 = vmatprep.subr.mxu0 0.0
    %805 = vmatpush1.xpose.msra.mxu0 0.0
    %806 = vmatprep.subr.mxu0 0.0
    %807 = vmatpush1.xpose.msra.mxu0 0.0
    %808 = vmatprep.subr.mxu0 0.0
    %809 = vmatpush1.xpose.msra.mxu0 0.0
    %810 = vmatprep.subr.mxu0 0.0
    %811 = vmatpush1.xpose.msra.mxu0 0.0
    %812 = vmatprep.mubr.f32.mxu0 0.0
    %813 = vmatmul.mubr.f32.gmra.mrb[0].mxu0 %v744
    %v814 = vpop.f32.mrb[0].mxu0
    %v815 = vadd.f32 0.0, %v814
    %v816 = vpop.f32.mrb[0].mxu0
    %817 = vdwg.mxu0
    %v818 = vmul.f32 %v283, 0.35355338
    %v819 = vmul.f32 %v359, 0.35355338
    %v820 = vmul.f32 %v435, 0.35355338
    %v821 = vmul.f32 %v511, 0.35355338
    %v822 = vmul.f32 %v587, 0.35355338
    %v823 = vmul.f32 %v663, 0.35355338
    %v824 = vmul.f32 %v739, 0.35355338
    %v825 = vmul.f32 %v815, 0.35355338
    %v826 = vsel %vm211, %v818, -inf
    %827 = vmax.xlane.f32.xlu0 %v826
    %v828 = vpop.xlane.xlu0 %827
    %v829 = vsel %vm211, %v819, -inf
    %830 = vmax.xlane.f32.xlu0 %v829
    %v831 = vpop.xlane.xlu0 %830
    %v832 = vsel %vm211, %v820, -inf
    %833 = vmax.xlane.f32.xlu0 %v832
    %v834 = vpop.xlane.xlu0 %833
    %v835 = vsel %vm211, %v821, -inf
    %836 = vmax.xlane.f32.xlu0 %v835
    %v837 = vpop.xlane.xlu0 %836
    %v838 = vsel %vm211, %v822, -inf
    %839 = vmax.xlane.f32.xlu0 %v838
    %v840 = vpop.xlane.xlu0 %839
    %v841 = vsel %vm211, %v823, -inf
    %842 = vmax.xlane.f32.xlu0 %v841
    %v843 = vpop.xlane.xlu0 %842
    %v844 = vsel %vm211, %v824, -inf
    %845 = vmax.xlane.f32.xlu0 %v844
    %v846 = vpop.xlane.xlu0 %845
    %v847 = vsel %vm211, %v825, -inf
    %848 = vmax.xlane.f32.xlu0 %v847
    %v849 = vpop.xlane.xlu0 %848
    %v850 = vsub.f32 %v818, %v828
    %v851 = vsub.f32 %v819, %v831
    %v852 = vsub.f32 %v820, %v834
    %v853 = vsub.f32 %v821, %v837
    %v854 = vsub.f32 %v822, %v840
    %v855 = vsub.f32 %v823, %v843
    %v856 = vsub.f32 %v824, %v846
    %v857 = vsub.f32 %v825, %v849
    %v858 = vmul.f32 %v850, 1.442695
    %v859 = vpow.pop %v858
    %v860 = vmul.f32 %v851, 1.442695
    %v861 = vpow.pop %v860
    %v862 = vmul.f32 %v852, 1.442695
    %v863 = vpow.pop %v862
    %v864 = vmul.f32 %v853, 1.442695
    %v865 = vpow.pop %v864
    %v866 = vmul.f32 %v854, 1.442695
    %v867 = vpow.pop %v866
    %v868 = vmul.f32 %v855, 1.442695
    %v869 = vpow.pop %v868
    %v870 = vmul.f32 %v856, 1.442695
    %v871 = vpow.pop %v870
    %v872 = vmul.f32 %v857, 1.442695
    %v873 = vpow.pop %v872
    %v874 = vsel %vm211, %v859, 0.0
    %875 = vadd.xlane.f32.xlu0 %v874
    %v876 = vpop.xlane.xlu0 %875
    %v877 = vsel %vm211, %v861, 0.0
    %878 = vadd.xlane.f32.xlu0 %v877
    %v879 = vpop.xlane.xlu0 %878
    %v880 = vsel %vm211, %v863, 0.0
    %881 = vadd.xlane.f32.xlu0 %v880
    %v882 = vpop.xlane.xlu0 %881
    %v883 = vsel %vm211, %v865, 0.0
    %884 = vadd.xlane.f32.xlu0 %v883
    %v885 = vpop.xlane.xlu0 %884
    %v886 = vsel %vm211, %v867, 0.0
    %887 = vadd.xlane.f32.xlu0 %v886
    %v888 = vpop.xlane.xlu0 %887
    %v889 = vsel %vm211, %v869, 0.0
    %890 = vadd.xlane.f32.xlu0 %v889
    %v891 = vpop.xlane.xlu0 %890
    %v892 = vsel %vm211, %v871, 0.0
    %893 = vadd.xlane.f32.xlu0 %v892
    %v894 = vpop.xlane.xlu0 %893
    %v895 = vsel %vm211, %v873, 0.0
    %896 = vadd.xlane.f32.xlu0 %v895
    %v897 = vpop.xlane.xlu0 %896
    %v898 = vrcp.pop %v876
    %v899 = vrcp.pop %v879
    %v900 = vrcp.pop %v882
    %v901 = vrcp.pop %v885
    %v902 = vrcp.pop %v888
    %v903 = vrcp.pop %v891
    %v904 = vrcp.pop %v894
    %v905 = vrcp.pop %v897
    %v906 = vmul.f32 %v859, %v898
    %v907 = vmul.f32 %v861, %v899
    %v908 = vmul.f32 %v863, %v900
    %v909 = vmul.f32 %v865, %v901
    %v910 = vmul.f32 %v867, %v902
    %v911 = vmul.f32 %v869, %v903
    %v912 = vmul.f32 %v871, %v904
    %v913 = vmul.f32 %v873, %v905
    %914 = vrot.lane.b32.xlu0 %v187, 64
    %v915 = vpop.permute.xlu0 %914
    %v918 = vsel %vm211, %v906, 0
    %920 = vmatprep.subr.mxu0 0.0
    %921 = vmatpush1.msra.mxu0 %v915
    %922 = vmatprep.subr.mxu0 0.0
    %923 = vmatpush1.msra.mxu0 0.0
    %924 = vmatprep.subr.mxu0 0.0
    %925 = vmatpush1.msra.mxu0 0.0
    %926 = vmatprep.subr.mxu0 0.0
    %927 = vmatpush1.msra.mxu0 0.0
    %928 = vmatprep.subr.mxu0 0.0
    %929 = vmatpush1.msra.mxu0 0.0
    %930 = vmatprep.subr.mxu0 0.0
    %931 = vmatpush1.msra.mxu0 0.0
    %932 = vmatprep.subr.mxu0 0.0
    %933 = vmatpush1.msra.mxu0 0.0
    %934 = vmatprep.subr.mxu0 0.0
    %935 = vmatpush1.msra.mxu0 0.0
    %936 = vmatprep.subr.mxu0 0.0
    %937 = vmatpush1.msra.mxu0 0.0
    %938 = vmatprep.subr.mxu0 0.0
    %939 = vmatpush1.msra.mxu0 0.0
    %940 = vmatprep.subr.mxu0 0.0
    %941 = vmatpush1.msra.mxu0 0.0
    %942 = vmatprep.subr.mxu0 0.0
    %943 = vmatpush1.msra.mxu0 0.0
    %944 = vmatprep.subr.mxu0 0.0
    %945 = vmatpush1.msra.mxu0 0.0
    %946 = vmatprep.subr.mxu0 0.0
    %947 = vmatpush1.msra.mxu0 0.0
    %948 = vmatprep.subr.mxu0 0.0
    %949 = vmatpush1.msra.mxu0 0.0
    %950 = vmatprep.subr.mxu0 0.0
    %951 = vmatpush1.msra.mxu0 0.0
    %952 = vmatprep.subr.mxu0 0.0
    %953 = vmatpush1.msra.mxu0 0.0
    %954 = vmatprep.subr.mxu0 0.0
    %955 = vmatpush1.msra.mxu0 0.0
    %956 = vmatprep.subr.mxu0 0.0
    %957 = vmatpush1.msra.mxu0 0.0
    %958 = vmatprep.subr.mxu0 0.0
    %959 = vmatpush1.msra.mxu0 0.0
    %960 = vmatprep.subr.mxu0 0.0
    %961 = vmatpush1.msra.mxu0 0.0
    %962 = vmatprep.subr.mxu0 0.0
    %963 = vmatpush1.msra.mxu0 0.0
    %964 = vmatprep.subr.mxu0 0.0
    %965 = vmatpush1.msra.mxu0 0.0
    %966 = vmatprep.subr.mxu0 0.0
    %967 = vmatpush1.msra.mxu0 0.0
    %968 = vmatprep.subr.mxu0 0.0
    %969 = vmatpush1.msra.mxu0 0.0
    %970 = vmatprep.subr.mxu0 0.0
    %971 = vmatpush1.msra.mxu0 0.0
    %972 = vmatprep.subr.mxu0 0.0
    %973 = vmatpush1.msra.mxu0 0.0
    %974 = vmatprep.subr.mxu0 0.0
    %975 = vmatpush1.msra.mxu0 0.0
    %976 = vmatprep.subr.mxu0 0.0
    %977 = vmatpush1.msra.mxu0 0.0
    %978 = vmatprep.subr.mxu0 0.0
    %979 = vmatpush1.msra.mxu0 0.0
    %980 = vmatprep.subr.mxu0 0.0
    %981 = vmatpush1.msra.mxu0 0.0
    %982 = vmatprep.subr.mxu0 0.0
    %983 = vmatpush1.msra.mxu0 0.0
    %984 = vmatprep.mubr.f32.mxu0 0.0
    %985 = vmatmul.mubr.f32.gmra.mrb[0].mxu0 %v918
    %v986 = vpop.f32.mrb[0].mxu0
    %v987 = vadd.f32 0.0, %v986
    %v988 = vpop.f32.mrb[0].mxu0
    %989 = vdwg.mxu0
    %990 = vrot.lane.b32.xlu0 %v192, 64
    %v991 = vpop.permute.xlu0 %990
    %v994 = vsel %vm211, %v907, 0
    %996 = vmatprep.subr.mxu0 0.0
    %997 = vmatpush1.msra.mxu0 %v991
    %998 = vmatprep.subr.mxu0 0.0
    %999 = vmatpush1.msra.mxu0 0.0
    %1000 = vmatprep.subr.mxu0 0.0
    %1001 = vmatpush1.msra.mxu0 0.0
    %1002 = vmatprep.subr.mxu0 0.0
    %1003 = vmatpush1.msra.mxu0 0.0
    %1004 = vmatprep.subr.mxu0 0.0
    %1005 = vmatpush1.msra.mxu0 0.0
    %1006 = vmatprep.subr.mxu0 0.0
    %1007 = vmatpush1.msra.mxu0 0.0
    %1008 = vmatprep.subr.mxu0 0.0
    %1009 = vmatpush1.msra.mxu0 0.0
    %1010 = vmatprep.subr.mxu0 0.0
    %1011 = vmatpush1.msra.mxu0 0.0
    %1012 = vmatprep.subr.mxu0 0.0
    %1013 = vmatpush1.msra.mxu0 0.0
    %1014 = vmatprep.subr.mxu0 0.0
    %1015 = vmatpush1.msra.mxu0 0.0
    %1016 = vmatprep.subr.mxu0 0.0
    %1017 = vmatpush1.msra.mxu0 0.0
    %1018 = vmatprep.subr.mxu0 0.0
    %1019 = vmatpush1.msra.mxu0 0.0
    %1020 = vmatprep.subr.mxu0 0.0
    %1021 = vmatpush1.msra.mxu0 0.0
    %1022 = vmatprep.subr.mxu0 0.0
    %1023 = vmatpush1.msra.mxu0 0.0
    %1024 = vmatprep.subr.mxu0 0.0
    %1025 = vmatpush1.msra.mxu0 0.0
    %1026 = vmatprep.subr.mxu0 0.0
    %1027 = vmatpush1.msra.mxu0 0.0
    %1028 = vmatprep.subr.mxu0 0.0
    %1029 = vmatpush1.msra.mxu0 0.0
    %1030 = vmatprep.subr.mxu0 0.0
    %1031 = vmatpush1.msra.mxu0 0.0
    %1032 = vmatprep.subr.mxu0 0.0
    %1033 = vmatpush1.msra.mxu0 0.0
    %1034 = vmatprep.subr.mxu0 0.0
    %1035 = vmatpush1.msra.mxu0 0.0
    %1036 = vmatprep.subr.mxu0 0.0
    %1037 = vmatpush1.msra.mxu0 0.0
    %1038 = vmatprep.subr.mxu0 0.0
    %1039 = vmatpush1.msra.mxu0 0.0
    %1040 = vmatprep.subr.mxu0 0.0
    %1041 = vmatpush1.msra.mxu0 0.0
    %1042 = vmatprep.subr.mxu0 0.0
    %1043 = vmatpush1.msra.mxu0 0.0
    %1044 = vmatprep.subr.mxu0 0.0
    %1045 = vmatpush1.msra.mxu0 0.0
    %1046 = vmatprep.subr.mxu0 0.0
    %1047 = vmatpush1.msra.mxu0 0.0
    %1048 = vmatprep.subr.mxu0 0.0
    %1049 = vmatpush1.msra.mxu0 0.0
    %1050 = vmatprep.subr.mxu0 0.0
    %1051 = vmatpush1.msra.mxu0 0.0
    %1052 = vmatprep.subr.mxu0 0.0
    %1053 = vmatpush1.msra.mxu0 0.0
    %1054 = vmatprep.subr.mxu0 0.0
    %1055 = vmatpush1.msra.mxu0 0.0
    %1056 = vmatprep.subr.mxu0 0.0
    %1057 = vmatpush1.msra.mxu0 0.0
    %1058 = vmatprep.subr.mxu0 0.0
    %1059 = vmatpush1.msra.mxu0 0.0
    %1060 = vmatprep.mubr.f32.mxu0 0.0
    %1061 = vmatmul.mubr.f32.gmra.mrb[0].mxu0 %v994
    %v1062 = vpop.f32.mrb[0].mxu0
    %v1063 = vadd.f32 0.0, %v1062
    %v1064 = vpop.f32.mrb[0].mxu0
    %1065 = vdwg.mxu0
    %1066 = vrot.lane.b32.xlu0 %v198, 64
    %v1067 = vpop.permute.xlu0 %1066
    %v1070 = vsel %vm211, %v908, 0
    %1072 = vmatprep.subr.mxu0 0.0
    %1073 = vmatpush1.msra.mxu0 %v1067
    %1074 = vmatprep.subr.mxu0 0.0
    %1075 = vmatpush1.msra.mxu0 0.0
    %1076 = vmatprep.subr.mxu0 0.0
    %1077 = vmatpush1.msra.mxu0 0.0
    %1078 = vmatprep.subr.mxu0 0.0
    %1079 = vmatpush1.msra.mxu0 0.0
    %1080 = vmatprep.subr.mxu0 0.0
    %1081 = vmatpush1.msra.mxu0 0.0
    %1082 = vmatprep.subr.mxu0 0.0
    %1083 = vmatpush1.msra.mxu0 0.0
    %1084 = vmatprep.subr.mxu0 0.0
    %1085 = vmatpush1.msra.mxu0 0.0
    %1086 = vmatprep.subr.mxu0 0.0
    %1087 = vmatpush1.msra.mxu0 0.0
    %1088 = vmatprep.subr.mxu0 0.0
    %1089 = vmatpush1.msra.mxu0 0.0
    %1090 = vmatprep.subr.mxu0 0.0
    %1091 = vmatpush1.msra.mxu0 0.0
    %1092 = vmatprep.subr.mxu0 0.0
    %1093 = vmatpush1.msra.mxu0 0.0
    %1094 = vmatprep.subr.mxu0 0.0
    %1095 = vmatpush1.msra.mxu0 0.0
    %1096 = vmatprep.subr.mxu0 0.0
    %1097 = vmatpush1.msra.mxu0 0.0
    %1098 = vmatprep.subr.mxu0 0.0
    %1099 = vmatpush1.msra.mxu0 0.0
    %1100 = vmatprep.subr.mxu0 0.0
    %1101 = vmatpush1.msra.mxu0 0.0
    %1102 = vmatprep.subr.mxu0 0.0
    %1103 = vmatpush1.msra.mxu0 0.0
    %1104 = vmatprep.subr.mxu0 0.0
    %1105 = vmatpush1.msra.mxu0 0.0
    %1106 = vmatprep.subr.mxu0 0.0
    %1107 = vmatpush1.msra.mxu0 0.0
    %1108 = vmatprep.subr.mxu0 0.0
    %1109 = vmatpush1.msra.mxu0 0.0
    %1110 = vmatprep.subr.mxu0 0.0
    %1111 = vmatpush1.msra.mxu0 0.0
    %1112 = vmatprep.subr.mxu0 0.0
    %1113 = vmatpush1.msra.mxu0 0.0
    %1114 = vmatprep.subr.mxu0 0.0
    %1115 = vmatpush1.msra.mxu0 0.0
    %1116 = vmatprep.subr.mxu0 0.0
    %1117 = vmatpush1.msra.mxu0 0.0
    %1118 = vmatprep.subr.mxu0 0.0
    %1119 = vmatpush1.msra.mxu0 0.0
    %1120 = vmatprep.subr.mxu0 0.0
    %1121 = vmatpush1.msra.mxu0 0.0
    %1122 = vmatprep.subr.mxu0 0.0
    %1123 = vmatpush1.msra.mxu0 0.0
    %1124 = vmatprep.subr.mxu0 0.0
    %1125 = vmatpush1.msra.mxu0 0.0
    %1126 = vmatprep.subr.mxu0 0.0
    %1127 = vmatpush1.msra.mxu0 0.0
    %1128 = vmatprep.subr.mxu0 0.0
    %1129 = vmatpush1.msra.mxu0 0.0
    %1130 = vmatprep.subr.mxu0 0.0
    %1131 = vmatpush1.msra.mxu0 0.0
    %1132 = vmatprep.subr.mxu0 0.0
    %1133 = vmatpush1.msra.mxu0 0.0
    %1134 = vmatprep.subr.mxu0 0.0
    %1135 = vmatpush1.msra.mxu0 0.0
    %1136 = vmatprep.mubr.f32.mxu0 0.0
    %1137 = vmatmul.mubr.f32.gmra.mrb[0].mxu0 %v1070
    %v1138 = vpop.f32.mrb[0].mxu0
    %v1139 = vadd.f32 0.0, %v1138
    %v1140 = vpop.f32.mrb[0].mxu0
    %1141 = vdwg.mxu0
    %1142 = vrot.lane.b32.xlu0 %v200, 64
    %v1143 = vpop.permute.xlu0 %1142
    %v1146 = vsel %vm211, %v909, 0
    %1148 = vmatprep.subr.mxu0 0.0
    %1149 = vmatpush1.msra.mxu0 %v1143
    %1150 = vmatprep.subr.mxu0 0.0
    %1151 = vmatpush1.msra.mxu0 0.0
    %1152 = vmatprep.subr.mxu0 0.0
    %1153 = vmatpush1.msra.mxu0 0.0
    %1154 = vmatprep.subr.mxu0 0.0
    %1155 = vmatpush1.msra.mxu0 0.0
    %1156 = vmatprep.subr.mxu0 0.0
    %1157 = vmatpush1.msra.mxu0 0.0
    %1158 = vmatprep.subr.mxu0 0.0
    %1159 = vmatpush1.msra.mxu0 0.0
    %1160 = vmatprep.subr.mxu0 0.0
    %1161 = vmatpush1.msra.mxu0 0.0
    %1162 = vmatprep.subr.mxu0 0.0
    %1163 = vmatpush1.msra.mxu0 0.0
    %1164 = vmatprep.subr.mxu0 0.0
    %1165 = vmatpush1.msra.mxu0 0.0
    %1166 = vmatprep.subr.mxu0 0.0
    %1167 = vmatpush1.msra.mxu0 0.0
    %1168 = vmatprep.subr.mxu0 0.0
    %1169 = vmatpush1.msra.mxu0 0.0
    %1170 = vmatprep.subr.mxu0 0.0
    %1171 = vmatpush1.msra.mxu0 0.0
    %1172 = vmatprep.subr.mxu0 0.0
    %1173 = vmatpush1.msra.mxu0 0.0
    %1174 = vmatprep.subr.mxu0 0.0
    %1175 = vmatpush1.msra.mxu0 0.0
    %1176 = vmatprep.subr.mxu0 0.0
    %1177 = vmatpush1.msra.mxu0 0.0
    %1178 = vmatprep.subr.mxu0 0.0
    %1179 = vmatpush1.msra.mxu0 0.0
    %1180 = vmatprep.subr.mxu0 0.0
    %1181 = vmatpush1.msra.mxu0 0.0
    %1182 = vmatprep.subr.mxu0 0.0
    %1183 = vmatpush1.msra.mxu0 0.0
    %1184 = vmatprep.subr.mxu0 0.0
    %1185 = vmatpush1.msra.mxu0 0.0
    %1186 = vmatprep.subr.mxu0 0.0
    %1187 = vmatpush1.msra.mxu0 0.0
    %1188 = vmatprep.subr.mxu0 0.0
    %1189 = vmatpush1.msra.mxu0 0.0
    %1190 = vmatprep.subr.mxu0 0.0
    %1191 = vmatpush1.msra.mxu0 0.0
    %1192 = vmatprep.subr.mxu0 0.0
    %1193 = vmatpush1.msra.mxu0 0.0
    %1194 = vmatprep.subr.mxu0 0.0
    %1195 = vmatpush1.msra.mxu0 0.0
    %1196 = vmatprep.subr.mxu0 0.0
    %1197 = vmatpush1.msra.mxu0 0.0
    %1198 = vmatprep.subr.mxu0 0.0
    %1199 = vmatpush1.msra.mxu0 0.0
    %1200 = vmatprep.subr.mxu0 0.0
    %1201 = vmatpush1.msra.mxu0 0.0
    %1202 = vmatprep.subr.mxu0 0.0
    %1203 = vmatpush1.msra.mxu0 0.0
    %1204 = vmatprep.subr.mxu0 0.0
    %1205 = vmatpush1.msra.mxu0 0.0
    %1206 = vmatprep.subr.mxu0 0.0
    %1207 = vmatpush1.msra.mxu0 0.0
    %1208 = vmatprep.subr.mxu0 0.0
    %1209 = vmatpush1.msra.mxu0 0.0
    %1210 = vmatprep.subr.mxu0 0.0
    %1211 = vmatpush1.msra.mxu0 0.0
    %1212 = vmatprep.mubr.f32.mxu0 0.0
    %1213 = vmatmul.mubr.f32.gmra.mrb[0].mxu0 %v1146
    %v1214 = vpop.f32.mrb[0].mxu0
    %v1215 = vadd.f32 0.0, %v1214
    %v1216 = vpop.f32.mrb[0].mxu0
    %1217 = vdwg.mxu0
    %1218 = vrot.lane.b32.xlu0 %v202, 64
    %v1219 = vpop.permute.xlu0 %1218
    %v1222 = vsel %vm211, %v910, 0
    %1224 = vmatprep.subr.mxu0 0.0
    %1225 = vmatpush1.msra.mxu0 %v1219
    %1226 = vmatprep.subr.mxu0 0.0
    %1227 = vmatpush1.msra.mxu0 0.0
    %1228 = vmatprep.subr.mxu0 0.0
    %1229 = vmatpush1.msra.mxu0 0.0
    %1230 = vmatprep.subr.mxu0 0.0
    %1231 = vmatpush1.msra.mxu0 0.0
    %1232 = vmatprep.subr.mxu0 0.0
    %1233 = vmatpush1.msra.mxu0 0.0
    %1234 = vmatprep.subr.mxu0 0.0
    %1235 = vmatpush1.msra.mxu0 0.0
    %1236 = vmatprep.subr.mxu0 0.0
    %1237 = vmatpush1.msra.mxu0 0.0
    %1238 = vmatprep.subr.mxu0 0.0
    %1239 = vmatpush1.msra.mxu0 0.0
    %1240 = vmatprep.subr.mxu0 0.0
    %1241 = vmatpush1.msra.mxu0 0.0
    %1242 = vmatprep.subr.mxu0 0.0
    %1243 = vmatpush1.msra.mxu0 0.0
    %1244 = vmatprep.subr.mxu0 0.0
    %1245 = vmatpush1.msra.mxu0 0.0
    %1246 = vmatprep.subr.mxu0 0.0
    %1247 = vmatpush1.msra.mxu0 0.0
    %1248 = vmatprep.subr.mxu0 0.0
    %1249 = vmatpush1.msra.mxu0 0.0
    %1250 = vmatprep.subr.mxu0 0.0
    %1251 = vmatpush1.msra.mxu0 0.0
    %1252 = vmatprep.subr.mxu0 0.0
    %1253 = vmatpush1.msra.mxu0 0.0
    %1254 = vmatprep.subr.mxu0 0.0
    %1255 = vmatpush1.msra.mxu0 0.0
    %1256 = vmatprep.subr.mxu0 0.0
    %1257 = vmatpush1.msra.mxu0 0.0
    %1258 = vmatprep.subr.mxu0 0.0
    %1259 = vmatpush1.msra.mxu0 0.0
    %1260 = vmatprep.subr.mxu0 0.0
    %1261 = vmatpush1.msra.mxu0 0.0
    %1262 = vmatprep.subr.mxu0 0.0
    %1263 = vmatpush1.msra.mxu0 0.0
    %1264 = vmatprep.subr.mxu0 0.0
    %1265 = vmatpush1.msra.mxu0 0.0
    %1266 = vmatprep.subr.mxu0 0.0
    %1267 = vmatpush1.msra.mxu0 0.0
    %1268 = vmatprep.subr.mxu0 0.0
    %1269 = vmatpush1.msra.mxu0 0.0
    %1270 = vmatprep.subr.mxu0 0.0
    %1271 = vmatpush1.msra.mxu0 0.0
    %1272 = vmatprep.subr.mxu0 0.0
    %1273 = vmatpush1.msra.mxu0 0.0
    %1274 = vmatprep.subr.mxu0 0.0
    %1275 = vmatpush1.msra.mxu0 0.0
    %1276 = vmatprep.subr.mxu0 0.0
    %1277 = vmatpush1.msra.mxu0 0.0
    %1278 = vmatprep.subr.mxu0 0.0
    %1279 = vmatpush1.msra.mxu0 0.0
    %1280 = vmatprep.subr.mxu0 0.0
    %1281 = vmatpush1.msra.mxu0 0.0
    %1282 = vmatprep.subr.mxu0 0.0
    %1283 = vmatpush1.msra.mxu0 0.0
    %1284 = vmatprep.subr.mxu0 0.0
    %1285 = vmatpush1.msra.mxu0 0.0
    %1286 = vmatprep.subr.mxu0 0.0
    %1287 = vmatpush1.msra.mxu0 0.0
    %1288 = vmatprep.mubr.f32.mxu0 0.0
    %1289 = vmatmul.mubr.f32.gmra.mrb[0].mxu0 %v1222
    %v1290 = vpop.f32.mrb[0].mxu0
    %v1291 = vadd.f32 0.0, %v1290
    %v1292 = vpop.f32.mrb[0].mxu0
    %1293 = vdwg.mxu0
    %1294 = vrot.lane.b32.xlu0 %v204, 64
    %v1295 = vpop.permute.xlu0 %1294
    %v1298 = vsel %vm211, %v911, 0
    %1300 = vmatprep.subr.mxu0 0.0
    %1301 = vmatpush1.msra.mxu0 %v1295
    %1302 = vmatprep.subr.mxu0 0.0
    %1303 = vmatpush1.msra.mxu0 0.0
    %1304 = vmatprep.subr.mxu0 0.0
    %1305 = vmatpush1.msra.mxu0 0.0
    %1306 = vmatprep.subr.mxu0 0.0
    %1307 = vmatpush1.msra.mxu0 0.0
    %1308 = vmatprep.subr.mxu0 0.0
    %1309 = vmatpush1.msra.mxu0 0.0
    %1310 = vmatprep.subr.mxu0 0.0
    %1311 = vmatpush1.msra.mxu0 0.0
    %1312 = vmatprep.subr.mxu0 0.0
    %1313 = vmatpush1.msra.mxu0 0.0
    %1314 = vmatprep.subr.mxu0 0.0
    %1315 = vmatpush1.msra.mxu0 0.0
    %1316 = vmatprep.subr.mxu0 0.0
    %1317 = vmatpush1.msra.mxu0 0.0
    %1318 = vmatprep.subr.mxu0 0.0
    %1319 = vmatpush1.msra.mxu0 0.0
    %1320 = vmatprep.subr.mxu0 0.0
    %1321 = vmatpush1.msra.mxu0 0.0
    %1322 = vmatprep.subr.mxu0 0.0
    %1323 = vmatpush1.msra.mxu0 0.0
    %1324 = vmatprep.subr.mxu0 0.0
    %1325 = vmatpush1.msra.mxu0 0.0
    %1326 = vmatprep.subr.mxu0 0.0
    %1327 = vmatpush1.msra.mxu0 0.0
    %1328 = vmatprep.subr.mxu0 0.0
    %1329 = vmatpush1.msra.mxu0 0.0
    %1330 = vmatprep.subr.mxu0 0.0
    %1331 = vmatpush1.msra.mxu0 0.0
    %1332 = vmatprep.subr.mxu0 0.0
    %1333 = vmatpush1.msra.mxu0 0.0
    %1334 = vmatprep.subr.mxu0 0.0
    %1335 = vmatpush1.msra.mxu0 0.0
    %1336 = vmatprep.subr.mxu0 0.0
    %1337 = vmatpush1.msra.mxu0 0.0
    %1338 = vmatprep.subr.mxu0 0.0
    %1339 = vmatpush1.msra.mxu0 0.0
    %1340 = vmatprep.subr.mxu0 0.0
    %1341 = vmatpush1.msra.mxu0 0.0
    %1342 = vmatprep.subr.mxu0 0.0
    %1343 = vmatpush1.msra.mxu0 0.0
    %1344 = vmatprep.subr.mxu0 0.0
    %1345 = vmatpush1.msra.mxu0 0.0
    %1346 = vmatprep.subr.mxu0 0.0
    %1347 = vmatpush1.msra.mxu0 0.0
    %1348 = vmatprep.subr.mxu0 0.0
    %1349 = vmatpush1.msra.mxu0 0.0
    %1350 = vmatprep.subr.mxu0 0.0
    %1351 = vmatpush1.msra.mxu0 0.0
    %1352 = vmatprep.subr.mxu0 0.0
    %1353 = vmatpush1.msra.mxu0 0.0
    %1354 = vmatprep.subr.mxu0 0.0
    %1355 = vmatpush1.msra.mxu0 0.0
    %1356 = vmatprep.subr.mxu0 0.0
    %1357 = vmatpush1.msra.mxu0 0.0
    %1358 = vmatprep.subr.mxu0 0.0
    %1359 = vmatpush1.msra.mxu0 0.0
    %1360 = vmatprep.subr.mxu0 0.0
    %1361 = vmatpush1.msra.mxu0 0.0
    %1362 = vmatprep.subr.mxu0 0.0
    %1363 = vmatpush1.msra.mxu0 0.0
    %1364 = vmatprep.mubr.f32.mxu0 0.0
    %1365 = vmatmul.mubr.f32.gmra.mrb[0].mxu0 %v1298
    %v1366 = vpop.f32.mrb[0].mxu0
    %v1367 = vadd.f32 0.0, %v1366
    %v1368 = vpop.f32.mrb[0].mxu0
    %1369 = vdwg.mxu0
    %1370 = vrot.lane.b32.xlu0 %v206, 64
    %v1371 = vpop.permute.xlu0 %1370
    %v1374 = vsel %vm211, %v912, 0
    %1376 = vmatprep.subr.mxu0 0.0
    %1377 = vmatpush1.msra.mxu0 %v1371
    %1378 = vmatprep.subr.mxu0 0.0
    %1379 = vmatpush1.msra.mxu0 0.0
    %1380 = vmatprep.subr.mxu0 0.0
    %1381 = vmatpush1.msra.mxu0 0.0
    %1382 = vmatprep.subr.mxu0 0.0
    %1383 = vmatpush1.msra.mxu0 0.0
    %1384 = vmatprep.subr.mxu0 0.0
    %1385 = vmatpush1.msra.mxu0 0.0
    %1386 = vmatprep.subr.mxu0 0.0
    %1387 = vmatpush1.msra.mxu0 0.0
    %1388 = vmatprep.subr.mxu0 0.0
    %1389 = vmatpush1.msra.mxu0 0.0
    %1390 = vmatprep.subr.mxu0 0.0
    %1391 = vmatpush1.msra.mxu0 0.0
    %1392 = vmatprep.subr.mxu0 0.0
    %1393 = vmatpush1.msra.mxu0 0.0
    %1394 = vmatprep.subr.mxu0 0.0
    %1395 = vmatpush1.msra.mxu0 0.0
    %1396 = vmatprep.subr.mxu0 0.0
    %1397 = vmatpush1.msra.mxu0 0.0
    %1398 = vmatprep.subr.mxu0 0.0
    %1399 = vmatpush1.msra.mxu0 0.0
    %1400 = vmatprep.subr.mxu0 0.0
    %1401 = vmatpush1.msra.mxu0 0.0
    %1402 = vmatprep.subr.mxu0 0.0
    %1403 = vmatpush1.msra.mxu0 0.0
    %1404 = vmatprep.subr.mxu0 0.0
    %1405 = vmatpush1.msra.mxu0 0.0
    %1406 = vmatprep.subr.mxu0 0.0
    %1407 = vmatpush1.msra.mxu0 0.0
    %1408 = vmatprep.subr.mxu0 0.0
    %1409 = vmatpush1.msra.mxu0 0.0
    %1410 = vmatprep.subr.mxu0 0.0
    %1411 = vmatpush1.msra.mxu0 0.0
    %1412 = vmatprep.subr.mxu0 0.0
    %1413 = vmatpush1.msra.mxu0 0.0
    %1414 = vmatprep.subr.mxu0 0.0
    %1415 = vmatpush1.msra.mxu0 0.0
    %1416 = vmatprep.subr.mxu0 0.0
    %1417 = vmatpush1.msra.mxu0 0.0
    %1418 = vmatprep.subr.mxu0 0.0
    %1419 = vmatpush1.msra.mxu0 0.0
    %1420 = vmatprep.subr.mxu0 0.0
    %1421 = vmatpush1.msra.mxu0 0.0
    %1422 = vmatprep.subr.mxu0 0.0
    %1423 = vmatpush1.msra.mxu0 0.0
    %1424 = vmatprep.subr.mxu0 0.0
    %1425 = vmatpush1.msra.mxu0 0.0
    %1426 = vmatprep.subr.mxu0 0.0
    %1427 = vmatpush1.msra.mxu0 0.0
    %1428 = vmatprep.subr.mxu0 0.0
    %1429 = vmatpush1.msra.mxu0 0.0
    %1430 = vmatprep.subr.mxu0 0.0
    %1431 = vmatpush1.msra.mxu0 0.0
    %1432 = vmatprep.subr.mxu0 0.0
    %1433 = vmatpush1.msra.mxu0 0.0
    %1434 = vmatprep.subr.mxu0 0.0
    %1435 = vmatpush1.msra.mxu0 0.0
    %1436 = vmatprep.subr.mxu0 0.0
    %1437 = vmatpush1.msra.mxu0 0.0
    %1438 = vmatprep.subr.mxu0 0.0
    %1439 = vmatpush1.msra.mxu0 0.0
    %1440 = vmatprep.mubr.f32.mxu0 0.0
    %1441 = vmatmul.mubr.f32.gmra.mrb[0].mxu0 %v1374
    %v1442 = vpop.f32.mrb[0].mxu0
    %v1443 = vadd.f32 0.0, %v1442
    %v1444 = vpop.f32.mrb[0].mxu0
    %1445 = vdwg.mxu0
    %1446 = vrot.lane.b32.xlu0 %v208, 64
    %v1447 = vpop.permute.xlu0 %1446
    %v1450 = vsel %vm211, %v913, 0
    %1452 = vmatprep.subr.mxu0 0.0
    %1453 = vmatpush1.msra.mxu0 %v1447
    %1454 = vmatprep.subr.mxu0 0.0
    %1455 = vmatpush1.msra.mxu0 0.0
    %1456 = vmatprep.subr.mxu0 0.0
    %1457 = vmatpush1.msra.mxu0 0.0
    %1458 = vmatprep.subr.mxu0 0.0
    %1459 = vmatpush1.msra.mxu0 0.0
    %1460 = vmatprep.subr.mxu0 0.0
    %1461 = vmatpush1.msra.mxu0 0.0
    %1462 = vmatprep.subr.mxu0 0.0
    %1463 = vmatpush1.msra.mxu0 0.0
    %1464 = vmatprep.subr.mxu0 0.0
    %1465 = vmatpush1.msra.mxu0 0.0
    %1466 = vmatprep.subr.mxu0 0.0
    %1467 = vmatpush1.msra.mxu0 0.0
    %1468 = vmatprep.subr.mxu0 0.0
    %1469 = vmatpush1.msra.mxu0 0.0
    %1470 = vmatprep.subr.mxu0 0.0
    %1471 = vmatpush1.msra.mxu0 0.0
    %1472 = vmatprep.subr.mxu0 0.0
    %1473 = vmatpush1.msra.mxu0 0.0
    %1474 = vmatprep.subr.mxu0 0.0
    %1475 = vmatpush1.msra.mxu0 0.0
    %1476 = vmatprep.subr.mxu0 0.0
    %1477 = vmatpush1.msra.mxu0 0.0
    %1478 = vmatprep.subr.mxu0 0.0
    %1479 = vmatpush1.msra.mxu0 0.0
    %1480 = vmatprep.subr.mxu0 0.0
    %1481 = vmatpush1.msra.mxu0 0.0
    %1482 = vmatprep.subr.mxu0 0.0
    %1483 = vmatpush1.msra.mxu0 0.0
    %1484 = vmatprep.subr.mxu0 0.0
    %1485 = vmatpush1.msra.mxu0 0.0
    %1486 = vmatprep.subr.mxu0 0.0
    %1487 = vmatpush1.msra.mxu0 0.0
    %1488 = vmatprep.subr.mxu0 0.0
    %1489 = vmatpush1.msra.mxu0 0.0
    %1490 = vmatprep.subr.mxu0 0.0
    %1491 = vmatpush1.msra.mxu0 0.0
    %1492 = vmatprep.subr.mxu0 0.0
    %1493 = vmatpush1.msra.mxu0 0.0
    %1494 = vmatprep.subr.mxu0 0.0
    %1495 = vmatpush1.msra.mxu0 0.0
    %1496 = vmatprep.subr.mxu0 0.0
    %1497 = vmatpush1.msra.mxu0 0.0
    %1498 = vmatprep.subr.mxu0 0.0
    %1499 = vmatpush1.msra.mxu0 0.0
    %1500 = vmatprep.subr.mxu0 0.0
    %1501 = vmatpush1.msra.mxu0 0.0
    %1502 = vmatprep.subr.mxu0 0.0
    %1503 = vmatpush1.msra.mxu0 0.0
    %1504 = vmatprep.subr.mxu0 0.0
    %1505 = vmatpush1.msra.mxu0 0.0
    %1506 = vmatprep.subr.mxu0 0.0
    %1507 = vmatpush1.msra.mxu0 0.0
    %1508 = vmatprep.subr.mxu0 0.0
    %1509 = vmatpush1.msra.mxu0 0.0
    %1510 = vmatprep.subr.mxu0 0.0
    %1511 = vmatpush1.msra.mxu0 0.0
    %1512 = vmatprep.subr.mxu0 0.0
    %1513 = vmatpush1.msra.mxu0 0.0
    %1514 = vmatprep.subr.mxu0 0.0
    %1515 = vmatpush1.msra.mxu0 0.0
    %1516 = vmatprep.mubr.f32.mxu0 0.0
    %1517 = vmatmul.mubr.f32.gmra.mrb[0].mxu0 %v1450
    %v1518 = vpop.f32.mrb[0].mxu0
    %v1519 = vadd.f32 0.0, %v1518
    %v1520 = vpop.f32.mrb[0].mxu0
    %1521 = vdwg.mxu0
    %1524 = vrot.lane.b32.xlu0 %v1139, 8
    %v1525 = vpop.permute.xlu0 %1524
    %1526 = vrot.lane.b32.xlu0 %v1215, 8
    %v1527 = vpop.permute.xlu0 %1526
    %1532 = vrot.lane.b32.xlu0 %v1291, 16
    %v1533 = vpop.permute.xlu0 %1532
    %1534 = vrot.lane.b32.xlu0 %v1367, 16
    %v1535 = vpop.permute.xlu0 %1534
    %1540 = vrot.lane.b32.xlu0 %v1443, 24
    %v1541 = vpop.permute.xlu0 %1540
    %1542 = vrot.lane.b32.xlu0 %v1519, 24
    %v1543 = vpop.permute.xlu0 %1542
    %v1546 = vsel %vm211, %v987, %v1525
    %v1547 = vsel %vm211, %v1063, %v1527
    %vm1548 = vcmask 130048
    %v1549 = vsel %vm1548, %v1546, %v1533
    %v1550 = vsel %vm1548, %v1547, %v1535
    %vm1551 = vcmask 195584
    %v1552 = vsel %vm1551, %v1549, %v1541
    %v1553 = vsel %vm1551, %v1550, %v1543
    %v1554 = vlaneseq
    %v1555 = vshrl.u32 %v1554, 7
    %v1556 = vsub.s32 0, %v1555
    %v1557 = vrot.slane %v68, %v1556
    %v1559 = vsel %vm70, %v1552, 0
    %v1562 = vsel %vm70, %v1553, 0
    %1564 = vmatprep.subr.mxu0 0.0
    %1565 = vmatpush1.msra.mxu0 %v46
    %1566 = vmatprep.subr.mxu0 0.0
    %1567 = vmatpush1.msra.mxu0 %v47
    %1568 = vmatprep.subr.mxu0 0.0
    %1569 = vmatpush1.msra.mxu0 %v48
    %1570 = vmatprep.subr.mxu0 0.0
    %1571 = vmatpush1.msra.mxu0 %v49
    %1572 = vmatprep.subr.mxu0 0.0
    %1573 = vmatpush1.msra.mxu0 0.0
    %1574 = vmatprep.subr.mxu0 0.0
    %1575 = vmatpush1.msra.mxu0 0.0
    %1576 = vmatprep.subr.mxu0 0.0
    %1577 = vmatpush1.msra.mxu0 0.0
    %1578 = vmatprep.subr.mxu0 0.0
    %1579 = vmatpush1.msra.mxu0 0.0
    %1580 = vmatprep.subr.mxu0 0.0
    %1581 = vmatpush1.msra.mxu0 0.0
    %1582 = vmatprep.subr.mxu0 0.0
    %1583 = vmatpush1.msra.mxu0 0.0
    %1584 = vmatprep.subr.mxu0 0.0
    %1585 = vmatpush1.msra.mxu0 0.0
    %1586 = vmatprep.subr.mxu0 0.0
    %1587 = vmatpush1.msra.mxu0 0.0
    %1588 = vmatprep.subr.mxu0 0.0
    %1589 = vmatpush1.msra.mxu0 0.0
    %1590 = vmatprep.subr.mxu0 0.0
    %1591 = vmatpush1.msra.mxu0 0.0
    %1592 = vmatprep.subr.mxu0 0.0
    %1593 = vmatpush1.msra.mxu0 0.0
    %1594 = vmatprep.subr.mxu0 0.0
    %1595 = vmatpush1.msra.mxu0 0.0
    %1596 = vmatprep.subr.mxu0 0.0
    %1597 = vmatpush1.msra.mxu0 0.0
    %1598 = vmatprep.subr.mxu0 0.0
    %1599 = vmatpush1.msra.mxu0 0.0
    %1600 = vmatprep.subr.mxu0 0.0
    %1601 = vmatpush1.msra.mxu0 0.0
    %1602 = vmatprep.subr.mxu0 0.0
    %1603 = vmatpush1.msra.mxu0 0.0
    %1604 = vmatprep.subr.mxu0 0.0
    %1605 = vmatpush1.msra.mxu0 0.0
    %1606 = vmatprep.subr.mxu0 0.0
    %1607 = vmatpush1.msra.mxu0 0.0
    %1608 = vmatprep.subr.mxu0 0.0
    %1609 = vmatpush1.msra.mxu0 0.0
    %1610 = vmatprep.subr.mxu0 0.0
    %1611 = vmatpush1.msra.mxu0 0.0
    %1612 = vmatprep.subr.mxu0 0.0
    %1613 = vmatpush1.msra.mxu0 0.0
    %1614 = vmatprep.subr.mxu0 0.0
    %1615 = vmatpush1.msra.mxu0 0.0
    %1616 = vmatprep.subr.mxu0 0.0
    %1617 = vmatpush1.msra.mxu0 0.0
    %1618 = vmatprep.subr.mxu0 0.0
    %1619 = vmatpush1.msra.mxu0 0.0
    %1620 = vmatprep.subr.mxu0 0.0
    %1621 = vmatpush1.msra.mxu0 0.0
    %1622 = vmatprep.subr.mxu0 0.0
    %1623 = vmatpush1.msra.mxu0 0.0
    %1624 = vmatprep.subr.mxu0 0.0
    %1625 = vmatpush1.msra.mxu0 0.0
    %1626 = vmatprep.subr.mxu0 0.0
    %1627 = vmatpush1.msra.mxu0 0.0
    %1628 = vmatprep.mubr.f32.mxu0 0.0
    %1629 = vmatmul.mubr.f32.gmra.mrb[0].mxu0 %v1559
    %v1630 = vpop.f32.mrb[0].mxu0
    %v1631 = vadd.f32 %v1557, %v1630
    %v1632 = vpop.f32.mrb[0].mxu0
    %1633 = vmatprep.mubr.f32.mxu0 0.0
    %1634 = vmatmul.mubr.f32.gmra.mrb[0].mxu0 %v1562
    %v1635 = vpop.f32.mrb[0].mxu0
    %v1636 = vadd.f32 %v1557, %v1635
    %v1637 = vpop.f32.mrb[0].mxu0
    %1638 = vdwg.mxu0
    %v1639 = vadd.f32 %v40, %v1631
    %v1640 = vadd.f32 %v41, %v1636
    %v1641 = vsel %vm70, %v1639, 0.0
    %1642 = vadd.xlane.f32.xlu0 %v1641
    %v1643 = vpop.xlane.xlu0 %1642
    %v1644 = vsel %vm70, %v1640, 0.0
    %1645 = vadd.xlane.f32.xlu0 %v1644
    %v1646 = vpop.xlane.xlu0 %1645
    %v1647 = vmul.f32 %v1643, %v77
    %v1648 = vmul.f32 %v1646, %v77
    %v1649 = vsub.f32 %v1639, %v1647
    %v1650 = vsub.f32 %v1640, %v1648
    %v1651 = vmul.f32 %v1649, %v1649
    %v1652 = vmul.f32 %v1650, %v1650
    %v1653 = vsel %vm70, %v1651, 0.0
    %1654 = vadd.xlane.f32.xlu0 %v1653
    %v1655 = vpop.xlane.xlu0 %1654
    %v1656 = vsel %vm70, %v1652, 0.0
    %1657 = vadd.xlane.f32.xlu0 %v1656
    %v1658 = vpop.xlane.xlu0 %1657
    %v1659 = vmul.f32 %v1655, %v77
    %v1660 = vmul.f32 %v1658, %v77
    %v1661 = vadd.f32 %v1659, 1e-05
    %v1662 = vadd.f32 %v1660, 1e-05
    %v1663 = vrsqrt.pop %v1661
    %v1664 = vrsqrt.pop %v1662
    %v1665 = vmul.f32 %v1649, %v1663
    %v1666 = vmul.f32 %v1650, %v1664
    %v1667 = vlaneseq
    %v1668 = vshrl.u32 %v1667, 7
    %v1669 = vsub.s32 0, %v1668
    %v1670 = vrot.slane %v66, %v1669
    %v1671 = vmul.f32 %v1665, %v1670
    %v1672 = vmul.f32 %v1666, %v1670
    %v1673 = vlaneseq
    %v1674 = vshrl.u32 %v1673, 7
    %v1675 = vsub.s32 0, %v1674
    %v1676 = vrot.slane %v67, %v1675
    %v1677 = vadd.f32 %v1671, %v1676
    %v1678 = vadd.f32 %v1672, %v1676
    %v1679 = vlaneseq
    %v1680 = vshrl.u32 %v1679, 7
    %v1681 = vsub.s32 0, %v1680
    %v1682 = vrot.slane %v63, %v1681
    %v1684 = vsel %vm70, %v1677, 0
    %v1687 = vsel %vm70, %v1678, 0
    %1689 = vmatprep.subr.mxu0 0.0
    %1690 = vmatpush1.msra.mxu0 %v50
    %1691 = vmatprep.subr.mxu0 0.0
    %1692 = vmatpush1.msra.mxu0 %v51
    %1693 = vmatprep.subr.mxu0 0.0
    %1694 = vmatpush1.msra.mxu0 %v52
    %1695 = vmatprep.subr.mxu0 0.0
    %1696 = vmatpush1.msra.mxu0 %v53
    %1697 = vmatprep.subr.mxu0 0.0
    %1698 = vmatpush1.msra.mxu0 0.0
    %1699 = vmatprep.subr.mxu0 0.0
    %1700 = vmatpush1.msra.mxu0 0.0
    %1701 = vmatprep.subr.mxu0 0.0
    %1702 = vmatpush1.msra.mxu0 0.0
    %1703 = vmatprep.subr.mxu0 0.0
    %1704 = vmatpush1.msra.mxu0 0.0
    %1705 = vmatprep.subr.mxu0 0.0
    %1706 = vmatpush1.msra.mxu0 0.0
    %1707 = vmatprep.subr.mxu0 0.0
    %1708 = vmatpush1.msra.mxu0 0.0
    %1709 = vmatprep.subr.mxu0 0.0
    %1710 = vmatpush1.msra.mxu0 0.0
    %1711 = vmatprep.subr.mxu0 0.0
    %1712 = vmatpush1.msra.mxu0 0.0
    %1713 = vmatprep.subr.mxu0 0.0
    %1714 = vmatpush1.msra.mxu0 0.0
    %1715 = vmatprep.subr.mxu0 0.0
    %1716 = vmatpush1.msra.mxu0 0.0
    %1717 = vmatprep.subr.mxu0 0.0
    %1718 = vmatpush1.msra.mxu0 0.0
    %1719 = vmatprep.subr.mxu0 0.0
    %1720 = vmatpush1.msra.mxu0 0.0
    %1721 = vmatprep.subr.mxu0 0.0
    %1722 = vmatpush1.msra.mxu0 0.0
    %1723 = vmatprep.subr.mxu0 0.0
    %1724 = vmatpush1.msra.mxu0 0.0
    %1725 = vmatprep.subr.mxu0 0.0
    %1726 = vmatpush1.msra.mxu0 0.0
    %1727 = vmatprep.subr.mxu0 0.0
    %1728 = vmatpush1.msra.mxu0 0.0
    %1729 = vmatprep.subr.mxu0 0.0
    %1730 = vmatpush1.msra.mxu0 0.0
    %1731 = vmatprep.subr.mxu0 0.0
    %1732 = vmatpush1.msra.mxu0 0.0
    %1733 = vmatprep.subr.mxu0 0.0
    %1734 = vmatpush1.msra.mxu0 0.0
    %1735 = vmatprep.subr.mxu0 0.0
    %1736 = vmatpush1.msra.mxu0 0.0
    %1737 = vmatprep.subr.mxu0 0.0
    %1738 = vmatpush1.msra.mxu0 0.0
    %1739 = vmatprep.subr.mxu0 0.0
    %1740 = vmatpush1.msra.mxu0 0.0
    %1741 = vmatprep.subr.mxu0 0.0
    %1742 = vmatpush1.msra.mxu0 0.0
    %1743 = vmatprep.subr.mxu0 0.0
    %1744 = vmatpush1.msra.mxu0 0.0
    %1745 = vmatprep.subr.mxu0 0.0
    %1746 = vmatpush1.msra.mxu0 0.0
    %1747 = vmatprep.subr.mxu0 0.0
    %1748 = vmatpush1.msra.mxu0 0.0
    %1749 = vmatprep.subr.mxu0 0.0
    %1750 = vmatpush1.msra.mxu0 0.0
    %1751 = vmatprep.subr.mxu0 0.0
    %1752 = vmatpush1.msra.mxu0 0.0
    %1753 = vmatprep.mubr.f32.mxu0 0.0
    %1754 = vmatmul.mubr.f32.gmra.mrb[0].mxu0 %v1684
    %v1755 = vpop.f32.mrb[0].mxu0
    %v1756 = vadd.f32 %v1682, %v1755
    %v1757 = vpop.f32.mrb[0].mxu0
    %1758 = vmatprep.mubr.f32.mxu0 0.0
    %1759 = vmatmul.mubr.f32.gmra.mrb[0].mxu0 %v1687
    %v1760 = vpop.f32.mrb[0].mxu0
    %v1761 = vadd.f32 %v1682, %v1760
    %v1762 = vpop.f32.mrb[0].mxu0
    %1763 = vdwg.mxu0
    %v1764 = vmul.f32 %v1756, 0.5
    %v1765 = vmul.f32 %v1761, 0.5
    %v1766 = vmul.f32 %v1756, 0.70710677
    %v1767 = vmul.f32 %v1761, 0.70710677
    %v1768 = vand.u32 2147483647, %v1766
    %v1769 = vand.u32 2147483647, %v1767
    %v1770 = vmul.f32 %v1768, 0.3275911
    %v1771 = vmul.f32 %v1769, 0.3275911
    %v1772 = vadd.f32 %v1770, 1.0
    %v1773 = vadd.f32 %v1771, 1.0
    %v1774 = vrcp.pop %v1772
    %v1775 = vmul.f32 1.0, %v1774
    %v1776 = vrcp.pop %v1773
    %v1777 = vmul.f32 1.0, %v1776
    %v1778 = vmul.f32 %v1775, 1.0614054
    %v1779 = vmul.f32 %v1777, 1.0614054
    %v1780 = vadd.f32 %v1778, -1.4531521
    %v1781 = vadd.f32 %v1779, -1.4531521
    %v1782 = vmul.f32 %v1775, %v1780
    %v1783 = vmul.f32 %v1777, %v1781
    %v1784 = vadd.f32 %v1782, 1.4214138
    %v1785 = vadd.f32 %v1783, 1.4214138
    %v1786 = vmul.f32 %v1775, %v1784
    %v1787 = vmul.f32 %v1777, %v1785
    %v1788 = vadd.f32 %v1786, -0.28449672
    %v1789 = vadd.f32 %v1787, -0.28449672
    %v1790 = vmul.f32 %v1775, %v1788
    %v1791 = vmul.f32 %v1777, %v1789
    %v1792 = vadd.f32 %v1790, 0.2548296
    %v1793 = vadd.f32 %v1791, 0.2548296
    %v1794 = vmul.f32 %v1775, %v1792
    %v1795 = vmul.f32 %v1777, %v1793
    %v1796 = vsub.f32 0.0, %v1768
    %v1797 = vsub.f32 0.0, %v1769
    %v1798 = vmul.f32 %v1796, %v1768
    %v1799 = vmul.f32 %v1797, %v1769
    %v1800 = vmul.f32 %v1798, 1.442695
    %v1801 = vpow.pop %v1800
    %v1802 = vmul.f32 %v1799, 1.442695
    %v1803 = vpow.pop %v1802
    %v1804 = vmul.f32 %v1794, %v1801
    %v1805 = vmul.f32 %v1795, %v1803
    %v1806 = vsub.f32 1.0, %v1804
    %v1807 = vsub.f32 1.0, %v1805
    %vm1808 = vcmp.lt.f32.partialorder %v1766, 0.0
    %vm1809 = vcmp.lt.f32.partialorder %v1767, 0.0
    %v1810 = vsub.f32 0.0, %v1806
    %v1811 = vsub.f32 0.0, %v1807
    %v1812 = vsel %vm1808, %v1810, %v1806
    %v1813 = vsel %vm1809, %v1811, %v1807
    %v1814 = vadd.f32 %v1812, 1.0
    %v1815 = vadd.f32 %v1813, 1.0
    %v1816 = vmul.f32 %v1764, %v1814
    %v1817 = vmul.f32 %v1765, %v1815
    %v1818 = vlaneseq
    %v1819 = vshrl.u32 %v1818, 7
    %v1820 = vsub.s32 0, %v1819
    %v1821 = vrot.slane %v69, %v1820
    %vm1822 = vcmask 523264
    %v1824 = vsel %vm1822, %v1816, 0
    %v1827 = vsel %vm1822, %v1817, 0
    %1829 = vmatprep.subr.mxu0 0.0
    %1830 = vmatpush1.msra.mxu0 %v54
    %1831 = vmatprep.subr.mxu0 0.0
    %1832 = vmatpush1.msra.mxu0 %v55
    %1833 = vmatprep.subr.mxu0 0.0
    %1834 = vmatpush1.msra.mxu0 %v56
    %1835 = vmatprep.subr.mxu0 0.0
    %1836 = vmatpush1.msra.mxu0 %v57
    %1837 = vmatprep.subr.mxu0 0.0
    %1838 = vmatpush1.msra.mxu0 %v58
    %1839 = vmatprep.subr.mxu0 0.0
    %1840 = vmatpush1.msra.mxu0 %v59
    %1841 = vmatprep.subr.mxu0 0.0
    %1842 = vmatpush1.msra.mxu0 %v60
    %1843 = vmatprep.subr.mxu0 0.0
    %1844 = vmatpush1.msra.mxu0 %v61
    %1845 = vmatprep.subr.mxu0 0.0
    %1846 = vmatpush1.msra.mxu0 0.0
    %1847 = vmatprep.subr.mxu0 0.0
    %1848 = vmatpush1.msra.mxu0 0.0
    %1849 = vmatprep.subr.mxu0 0.0
    %1850 = vmatpush1.msra.mxu0 0.0
    %1851 = vmatprep.subr.mxu0 0.0
    %1852 = vmatpush1.msra.mxu0 0.0
    %1853 = vmatprep.subr.mxu0 0.0
    %1854 = vmatpush1.msra.mxu0 0.0
    %1855 = vmatprep.subr.mxu0 0.0
    %1856 = vmatpush1.msra.mxu0 0.0
    %1857 = vmatprep.subr.mxu0 0.0
    %1858 = vmatpush1.msra.mxu0 0.0
    %1859 = vmatprep.subr.mxu0 0.0
    %1860 = vmatpush1.msra.mxu0 0.0
    %1861 = vmatprep.subr.mxu0 0.0
    %1862 = vmatpush1.msra.mxu0 0.0
    %1863 = vmatprep.subr.mxu0 0.0
    %1864 = vmatpush1.msra.mxu0 0.0
    %1865 = vmatprep.subr.mxu0 0.0
    %1866 = vmatpush1.msra.mxu0 0.0
    %1867 = vmatprep.subr.mxu0 0.0
    %1868 = vmatpush1.msra.mxu0 0.0
    %1869 = vmatprep.subr.mxu0 0.0
    %1870 = vmatpush1.msra.mxu0 0.0
    %1871 = vmatprep.subr.mxu0 0.0
    %1872 = vmatpush1.msra.mxu0 0.0
    %1873 = vmatprep.subr.mxu0 0.0
    %1874 = vmatpush1.msra.mxu0 0.0
    %1875 = vmatprep.subr.mxu0 0.0
    %1876 = vmatpush1.msra.mxu0 0.0
    %1877 = vmatprep.subr.mxu0 0.0
    %1878 = vmatpush1.msra.mxu0 0.0
    %1879 = vmatprep.subr.mxu0 0.0
    %1880 = vmatpush1.msra.mxu0 0.0
    %1881 = vmatprep.subr.mxu0 0.0
    %1882 = vmatpush1.msra.mxu0 0.0
    %1883 = vmatprep.subr.mxu0 0.0
    %1884 = vmatpush1.msra.mxu0 0.0
    %1885 = vmatprep.subr.mxu0 0.0
    %1886 = vmatpush1.msra.mxu0 0.0
    %1887 = vmatprep.subr.mxu0 0.0
    %1888 = vmatpush1.msra.mxu0 0.0
    %1889 = vmatprep.subr.mxu0 0.0
    %1890 = vmatpush1.msra.mxu0 0.0
    %1891 = vmatprep.subr.mxu0 0.0
    %1892 = vmatpush1.msra.mxu0 0.0
    %1893 = vmatprep.mubr.f32.mxu0 0.0
    %1894 = vmatmul.mubr.f32.gmra.mrb[0].mxu0 %v1824
    %v1895 = vpop.f32.mrb[0].mxu0
    %v1896 = vadd.f32 %v1821, %v1895
    %v1897 = vpop.f32.mrb[0].mxu0
    %1898 = vmatprep.mubr.f32.mxu0 0.0
    %1899 = vmatmul.mubr.f32.gmra.mrb[0].mxu0 %v1827
    %v1900 = vpop.f32.mrb[0].mxu0
    %v1901 = vadd.f32 %v1821, %v1900
    %v1902 = vpop.f32.mrb[0].mxu0
    %1903 = vdwg.mxu0
    %v1904 = vadd.f32 %v1639, %v1896
    %v1905 = vadd.f32 %v1640, %v1901
    %1906 = vst.msk [vmem:[#allocation7] sm:$0xff] %vm70, %v1904
    %1907 = vst.msk [vmem:[#allocation7 + $0x8] sm:$0xff] %vm70, %v1905
    // Predicated region
    $region18: #{tpu_custom_call.1} parent=1 // pred_check
      _
    $region19: #{tpu_custom_call.1} parent=1 // pred_check_branch
      %1909 = sbr.rel (0) target = $region21
    $region20: #{tpu_custom_call.1} parent=1 // pred_region
      %s1911 = ssub.s32 256, 256
      %1912 = vsyncadd [#allocation4], %s1911
      %s1913 = sshll.u32 [#allocation7], 4
      %s1914 = int_to_ptr.vmem [resolvable:$true] %s1913
      %1919 = dma.vmem_to_hbm [thread:$0]  %s1914, 256, %s2, [#allocation4], 128, 128, 8
    $region21: #{tpu_custom_call.1} parent=1 // pred_fallthru
      _
    // Predicated region
    $region22: #{tpu_custom_call.1} parent=1 // pred_check
      _
    $region23: #{tpu_custom_call.1} parent=1 // pred_check_branch
      %1921 = sbr.rel (0) target = $region25
    $region24: #{tpu_custom_call.1} parent=1 // pred_region
      %1922 = dma.done [#allocation4], 256
    $region25: #{tpu_custom_call.1} parent=1 // pred_fallthru
      _
    %1923 = vsyncpa [#allocation3], 1
    %1924 = vsyncpa [#allocation6], 1
    %1925 = vsyncpa [#allocation4], 1

</llo_original>
